<compile_context>
chip_gen: v6e
topology: v6e:2x2x1
jax: 0.10.0
libtpu: 0.0.40
codegen_flags: <defaults>
</compile_context>

<pallas_src>
import functools
import math

import jax
import jax.numpy as jnp
from jax.experimental import pallas as pl
from jax.experimental.pallas import tpu as pltpu


# ----------------------------- small helpers -----------------------------

def _vmem_capacity_bytes():
    try:
        return int(pltpu.get_tpu_info().vmem_capacity_bytes)
    except Exception:
        return 128 * 1024 * 1024


def _pick_tile(n, max_tile):
    """Largest multiple-of-128 tile <= max_tile that evenly divides n (n % 128 == 0)."""
    assert n % 128 == 0
    t = min(n, max_tile)
    t -= t % 128
    while n % t:
        t -= 128
    return t


def _pick_q_tile(t_len, max_tile):
    """Query-tile for attention: full T when small, else a divisor (multiple of 8)."""
    if t_len <= max_tile:
        return t_len
    t = max_tile - (max_tile % 8)
    while t > 8 and t_len % t:
        t -= 8
    return t if t_len % t == 0 else t_len


def _pad_to(x, mult, axis):
    pad = (-x.shape[axis]) % mult
    if pad == 0:
        return x
    widths = [(0, 0)] * x.ndim
    widths[axis] = (0, pad)
    return jnp.pad(x, widths)


def _layernorm(v, gamma, beta, eps=1e-5):
    mu = jnp.mean(v, axis=-1, keepdims=True)
    var = jnp.mean((v - mu) ** 2, axis=-1, keepdims=True)
    return (v - mu) * jax.lax.rsqrt(var + eps) * gamma + beta


# --------------------- all-layers transformer kernel ---------------------

def gpt_layers_kernel(x_ref, wqkv_ref, wo_ref, vecs_ref, w1_ref, b1_ref, w2_ref,
                      o_ref, x_cur, h1f, h1b, acc_ref, *, heads, q_tile):
    # vecs_ref[0] rows: 0=bo, 1=g1, 2=be1, 3=b2, 4=g2, 5=be2  (each a (1, E) f32 row)
    bb, T, E = x_ref.shape
    hd = E // heads
    layer = pl.program_id(1)
    j = pl.program_id(2)                  # FFN-expansion tile index
    n_l = pl.num_programs(1)
    n_fe = pl.num_programs(2)

    # load the layer-0 input once per batch block; x_cur then carries activations
    # across layers entirely in VMEM.
    @pl.when(jnp.logical_and(layer == 0, j == 0))
    def _load_input():
        x_cur[...] = x_ref[...]

    # ---- attention + norm1: once per (batch block, layer), on the first FFN tile ----
    @pl.when(j == 0)
    def _attn_and_norm1():
        vecs = vecs_ref[0]                                         # (6, E) f32
        xin = x_cur[...]                                           # (bb, T, E) bf16
        # fused QKV projection: one (hd, 3*hd) matmul, 1/sqrt(E) folded into the Q slice
        xh = jnp.swapaxes(xin.reshape(bb, T, heads, hd), 1, 2)     # (bb, H, T, hd)
        qkv = jnp.dot(xh.reshape(bb * heads * T, hd), wqkv_ref[0],
                      preferred_element_type=jnp.float32)          # (bb*H*T, 3hd)
        qkv = qkv.reshape(bb * heads, T, 3 * hd)
        q = qkv[:, :, :hd].astype(jnp.bfloat16)
        k = qkv[:, :, hd:2 * hd].astype(jnp.bfloat16)
        v = qkv[:, :, 2 * hd:].astype(jnp.bfloat16)
        wo = wo_ref[0]
        # query-tiled attention: live score tensor bounded to (bb*H, q_tile, T)
        for q0 in range(0, T, q_tile):
            qt = q[:, q0:q0 + q_tile, :]
            energy = jnp.einsum("nqd,nkd->nqk", qt, k,
                                preferred_element_type=jnp.float32)
            m = jnp.max(energy, axis=-1, keepdims=True)
            p = jnp.exp(energy - m)
            attn = p * pl.reciprocal(jnp.sum(p, axis=-1, keepdims=True), approx=True)
            ctx = jnp.einsum("nqk,nkd->nqd", attn.astype(jnp.bfloat16), v,
                             preferred_element_type=jnp.float32)   # (bb*H, tq, hd)
            ctx = jnp.swapaxes(ctx.reshape(bb, heads, q_tile, hd), 1, 2)
            ctx = ctx.reshape(bb * q_tile, E).astype(jnp.bfloat16)
            attn_out = jnp.dot(ctx, wo,
                               preferred_element_type=jnp.float32) + vecs[0:1, :]
            xq = xin[:, q0:q0 + q_tile, :].astype(jnp.float32).reshape(bb * q_tile, E)
            h1t = _layernorm(attn_out + xq, vecs[1:2, :], vecs[2:3, :])
            h1f[:, q0:q0 + q_tile, :] = h1t.reshape(bb, q_tile, E)
            h1b[:, q0:q0 + q_tile, :] = h1t.astype(jnp.bfloat16).reshape(bb, q_tile, E)

    # ---- FFN partial product for this expansion tile (f32 accumulation) ----
    h1 = h1b[...].reshape(bb * T, E)                               # cached bf16 h1
    ff = jnp.dot(h1, w1_ref[0], preferred_element_type=jnp.float32) + b1_ref[0]
    ff = jnp.maximum(ff, 0.0)
    partial = jnp.dot(ff.astype(jnp.bfloat16), w2_ref[0],
                      preferred_element_type=jnp.float32).reshape(bb, T, E)

    @pl.when(j == 0)
    def _acc_init():
        acc_ref[...] = partial

    @pl.when(j > 0)
    def _acc_add():
        acc_ref[...] += partial

    # ---- finalize layer: second FFN bias + residual + norm2; carry in VMEM ----
    @pl.when(j == n_fe - 1)
    def _finalize():
        vecs = vecs_ref[0]
        out = _layernorm(acc_ref[...] + vecs[3:4, :] + h1f[...],
                         vecs[4:5, :], vecs[5:6, :])
        x_cur[...] = out.astype(x_cur.dtype)                       # next layer's input

    @pl.when(jnp.logical_and(j == n_fe - 1, layer == n_l - 1))
    def _store_output():
        o_ref[...] = x_cur[...]


def gpt_layers(x, sp, *, heads):
    """All transformer layers in one pallas_call.

    grid = (batch blocks [parallel], layers [arbitrary], FFN tiles [arbitrary]);
    activations stay VMEM-resident across layers, weights stream once per
    (batch block, layer).
    """
    B, T, E = x.shape
    assert E % heads == 0
    L, hd, _ = sp["wqkv_t"].shape
    FEp = sp["w1_t"].shape[2]

    cap = _vmem_capacity_bytes()
    small_vmem = cap <= 64 * 1024 * 1024                  # e.g. v7x (64 MiB / TC)
    tile_fe = _pick_tile(FEp, 512 if small_vmem else 2048)
    q_tile = _pick_q_tile(T, 128 if small_vmem else 256)
    n_fe = FEp // tile_fe
    # >= 2 batch blocks when possible so both v7x TensorCores get work, while still
    # amortizing weight streaming over bb rows per block.
    bb = B // 2 if (B >= 2 and B % 2 == 0) else B
    n_bb = B // bb
    vmem_limit = min(cap * 3 // 4, 100 * 1024 * 1024)

    kernel = functools.partial(gpt_layers_kernel, heads=heads, q_tile=q_tile)

    return pl.pallas_call(
        kernel,
        out_shape=jax.ShapeDtypeStruct((B, T, E), jnp.bfloat16),
        grid=(n_bb, L, n_fe),
        in_specs=[
            pl.BlockSpec((bb, T, E), lambda b, l, j: (b, 0, 0)),       # x (layer-0 input)
            pl.BlockSpec((1, hd, 3 * hd), lambda b, l, j: (l, 0, 0)),  # fused QKV (scaled)
            pl.BlockSpec((1, E, E), lambda b, l, j: (l, 0, 0)),        # wo (T)
            pl.BlockSpec((1, 6, E), lambda b, l, j: (l, 0, 0)),        # packed vectors
            pl.BlockSpec((1, E, tile_fe), lambda b, l, j: (l, 0, j)),  # w1 tile (T)
            pl.BlockSpec((1, 1, tile_fe), lambda b, l, j: (l, 0, j)),  # b1 tile
            pl.BlockSpec((1, tile_fe, E), lambda b, l, j: (l, j, 0)),  # w2 tile (T)
        ],
        out_specs=pl.BlockSpec((bb, T, E), lambda b, l, j: (b, 0, 0)),
        scratch_shapes=[
            pltpu.VMEM((bb, T, E), jnp.bfloat16),   # current-layer input (carried)
            pltpu.VMEM((bb, T, E), jnp.float32),    # h1 (post-norm1), f32 for residual
            pltpu.VMEM((bb, T, E), jnp.bfloat16),   # h1 cached bf16 for FFN matmuls
            pltpu.VMEM((bb, T, E), jnp.float32),    # FFN accumulator
        ],
        compiler_params=pltpu.CompilerParams(
            dimension_semantics=("parallel", "arbitrary", "arbitrary"),
            vmem_limit_bytes=vmem_limit),
    )(x, sp["wqkv_t"], sp["wo_t"], sp["vecs"], sp["w1_t"], sp["b1"], sp["w2_t"])


# --------------------------- final norm + lm-head ---------------------------

def head_kernel(x_ref, nvec_ref, w_ref, b_ref, o_ref):
    # LayerNorm recomputed per vocab tile (cheap vs. the (B*T,E)x(E,tile_v) matmul;
    # keeps the vocab axis fully "parallel" with no cross-iteration scratch).
    B, T, E = x_ref.shape
    x = x_ref[...].astype(jnp.float32).reshape(B * T, E)
    xn = _layernorm(x, nvec_ref[0:1, :], nvec_ref[1:2, :])
    logits = jnp.dot(xn.astype(jnp.bfloat16), w_ref[...],
                     preferred_element_type=jnp.float32) + b_ref[...]
    o_ref[...] = logits.reshape(o_ref.shape).astype(o_ref.dtype)


def lm_head(x, norm_vecs, w_t, b):
    B, T, E = x.shape
    Vp = w_t.shape[1]
    cap = _vmem_capacity_bytes()
    tile_v = _pick_tile(Vp, 1024 if cap <= 64 * 1024 * 1024 else 2048)
    n_v = Vp // tile_v
    vmem_limit = min(cap * 3 // 4, 100 * 1024 * 1024)

    return pl.pallas_call(
        head_kernel,
        out_shape=jax.ShapeDtypeStruct((B, T, Vp), jnp.bfloat16),
        grid=(n_v,),
        in_specs=[
            pl.BlockSpec((B, T, E), lambda jv: (0, 0, 0)),       # x (resident across tiles)
            pl.BlockSpec((2, E), lambda jv: (0, 0)),             # [gamma; beta]
            pl.BlockSpec((E, tile_v), lambda jv: (0, jv)),       # fc_w (T), vocab tile
            pl.BlockSpec((1, tile_v), lambda jv: (0, jv)),       # fc_b vocab tile
        ],
        out_specs=pl.BlockSpec((B, T, tile_v), lambda jv: (0, 0, jv)),
        compiler_params=pltpu.CompilerParams(
            dimension_semantics=("parallel",),
            vmem_limit_bytes=vmem_limit),
    )(x, norm_vecs, w_t, b)


# ----------------------------- parameters -----------------------------

def init_params(key, vocab_size, embed_size, num_layers, heads, forward_expansion,
                max_length):
    hd = embed_size // heads
    fe = forward_expansion * embed_size
    ks = jax.random.split(key, 4 + num_layers)

    def lin(k, out_dim, in_dim):
        bound = 1.0 / math.sqrt(in_dim)
        return jax.random.uniform(k, (out_dim, in_dim), jnp.float32, -bound, bound)

    params = {
        "embed": jax.random.normal(ks[0], (vocab_size, embed_size), jnp.float32) * 0.02,
        "pos_embed": jax.random.normal(ks[1], (max_length, embed_size), jnp.float32) * 0.02,
        "norm_g": jnp.ones((1, embed_size), jnp.float32),
        "norm_b": jnp.zeros((1, embed_size), jnp.float32),
        "fc_w": lin(ks[2], vocab_size, embed_size),
        "fc_b": jax.random.normal(ks[3], (1, vocab_size), jnp.float32) * 0.02,
        "layers": [],
    }
    for li in range(num_layers):
        lk = jax.random.split(ks[4 + li], 8)
        params["layers"].append({
            "wq": lin(lk[0], hd, hd),
            "wk": lin(lk[1], hd, hd),
            "wv": lin(lk[2], hd, hd),
            "wo": lin(lk[3], embed_size, embed_size),
            "bo": jax.random.normal(lk[4], (1, embed_size), jnp.float32) * 0.02,
            "g1": jnp.ones((1, embed_size), jnp.float32),
            "be1": jnp.zeros((1, embed_size), jnp.float32),
            "w1": lin(lk[5], fe, embed_size),
            "b1": jax.random.normal(lk[6], (1, fe), jnp.float32) * 0.02,
            "w2": lin(lk[7], embed_size, fe),
            "b2": jnp.zeros((1, embed_size), jnp.float32),
            "g2": jnp.ones((1, embed_size), jnp.float32),
            "be2": jnp.zeros((1, embed_size), jnp.float32),
        })
    return params


def prepare_kernel_params(params):
    """One-time weight prep: pre-transpose to (in, out), fuse QKV into one (hd, 3hd)
    matrix (1/sqrt(E) folded into the Q slice), stack per-layer weights with a leading
    layer dim, pad FE / vocab to multiples of 128, cast matmul weights to bf16, and
    pack small per-layer vectors into one (6, E) array."""
    E = params["embed"].shape[1]
    scale = 1.0 / math.sqrt(float(E))
    bf = jnp.bfloat16
    wqkv, wo, vecs, w1, b1, w2 = [], [], [], [], [], []
    for lp in params["layers"]:
        wqkv.append(jnp.concatenate([lp["wq"].T * scale, lp["wk"].T, lp["wv"].T],
                                    axis=1).astype(bf))                  # (hd, 3hd)
        wo.append(lp["wo"].T.astype(bf))                                 # (E, E)
        vecs.append(jnp.concatenate([lp["bo"], lp["g1"], lp["be1"],
                                     lp["b2"], lp["g2"], lp["be2"]], axis=0))  # (6, E)
        w1.append(_pad_to(lp["w1"].T, 128, axis=1).astype(bf))           # (E, FEp)
        b1.append(_pad_to(lp["b1"], 128, axis=1))                        # (1, FEp) f32
        w2.append(_pad_to(lp["w2"].T, 128, axis=0).astype(bf))           # (FEp, E)
    return {
        "wqkv_t": jnp.stack(wqkv),                   # (L, hd, 3hd) bf16
        "wo_t": jnp.stack(wo),                       # (L, E, E) bf16
        "vecs": jnp.stack(vecs),                     # (L, 6, E) f32
        "w1_t": jnp.stack(w1),                       # (L, E, FEp) bf16
        "b1": jnp.stack(b1),                         # (L, 1, FEp) f32
        "w2_t": jnp.stack(w2),                       # (L, FEp, E) bf16
        "norm_vecs": jnp.concatenate([params["norm_g"], params["norm_b"]], axis=0),
        "fc_w_t": _pad_to(params["fc_w"].T, 128, axis=1).astype(bf),     # (E, Vp)
        "fc_b": _pad_to(params["fc_b"], 128, axis=1),                    # (1, Vp) f32
    }


def gpt_forward(params, tokens, *, heads):
    B, T = tokens.shape
    V = params["embed"].shape[0]
    kp = prepare_kernel_params(params)
    # glue: embedding gathers + positional embedding; dropout = identity (eval).
    x = jnp.take(params["embed"], tokens, axis=0) + params["pos_embed"][:T][None, :, :]
    x = gpt_layers(x.astype(jnp.bfloat16), kp, heads=heads)       # bf16 activations
    logits = lm_head(x, kp["norm_vecs"], kp["fc_w_t"], kp["fc_b"])
    return logits[..., :V].astype(jnp.float32)                    # drop vocab padding


# ----------------------------- pure-JAX reference (f32) -----------------------------

def _ref_forward(params, tokens, *, heads):
    B, T = tokens.shape
    E = params["embed"].shape[1]
    hd = E // heads
    x = jnp.take(params["embed"], tokens, axis=0) + params["pos_embed"][:T][None, :, :]

    def ln(v, g, b):
        mu = v.mean(-1, keepdims=True)
        var = ((v - mu) ** 2).mean(-1, keepdims=True)
        return (v - mu) / jnp.sqrt(var + 1e-5) * g + b

    for lp in params["layers"]:
        xh = x.reshape(B, T, heads, hd)
        q = jnp.einsum("bthd,ed->bthe", xh, lp["wq"])
        k = jnp.einsum("bthd,ed->bthe", xh, lp["wk"])
        v = jnp.einsum("bthd,ed->bthe", xh, lp["wv"])
        energy = jnp.einsum("bqhd,bkhd->bhqk", q, k) / math.sqrt(E)
        attn = jax.nn.softmax(energy, axis=-1)
        o = jnp.einsum("bhqk,bkhd->bqhd", attn, v).reshape(B, T, E)
        o = o @ lp["wo"].T + lp["bo"]
        h1 = ln(o + x, lp["g1"], lp["be1"])
        ff = jnp.maximum(h1 @ lp["w1"].T + lp["b1"], 0.0) @ lp["w2"].T + lp["b2"]
        x = ln(ff + h1, lp["g2"], lp["be2"])
    x = ln(x, params["norm_g"], params["norm_b"])
    return x @ params["fc_w"].T + params["fc_b"]


# ----------------------------------- main -----------------------------------

if __name__ == "__main__":
    vocab_size = 64
    embed_size = 32
    num_layers = 2
    heads = 4
    forward_expansion = 4
    max_length = 16
    B, T = 2, 8

    key = jax.random.PRNGKey(0)
    pkey, tkey = jax.random.split(key)
    params = init_params(pkey, vocab_size, embed_size, num_layers, heads,
                         forward_expansion, max_length)
    tokens = jax.random.randint(tkey, (B, T), 0, vocab_size, dtype=jnp.int32)

    logits = gpt_forward(params, tokens, heads=heads)
    logits = jax.block_until_ready(logits)
    assert logits.shape == (B, T, vocab_size)

    # Tolerance accounts for bf16 MXU inputs (f32 accumulation), bf16 inter-layer
    # activations / logits, and the EUP approx reciprocal vs. the pure-f32 reference.
    ref = _ref_forward(params, tokens, heads=heads)
    assert jnp.allclose(logits, ref, atol=5e-2, rtol=5e-2), "mismatch vs JAX reference"

    # TODO(synk): no causal mask is applied, matching the PyTorch module's mask=None path.
    print("KERNEL_OK")
</pallas_src>

<mosaic_0001>
module attributes {stable_mosaic.version = 11 : i64} {
  func.func @gpt_layers_kernel(%arg0: i32, %arg1: i32, %arg2: i32, %arg3: memref<1x8x32xbf16, #tpu.memory_space<vmem>>, %arg4: memref<1x8x24xbf16, #tpu.memory_space<vmem>>, %arg5: memref<1x32x32xbf16, #tpu.memory_space<vmem>>, %arg6: memref<1x6x32xf32, #tpu.memory_space<vmem>>, %arg7: memref<1x32x128xbf16, #tpu.memory_space<vmem>>, %arg8: memref<1x1x128xf32, #tpu.memory_space<vmem>>, %arg9: memref<1x128x32xbf16, #tpu.memory_space<vmem>>, %arg10: memref<1x8x32xbf16, #tpu.memory_space<vmem>>, %arg11: memref<1x8x32xbf16, #tpu.memory_space<vmem>>, %arg12: memref<1x8x32xf32, #tpu.memory_space<vmem>>, %arg13: memref<1x8x32xbf16, #tpu.memory_space<vmem>>, %arg14: memref<1x8x32xf32, #tpu.memory_space<vmem>>) attributes {dimension_semantics = [#tpu.dimension_semantics<parallel>, #tpu.dimension_semantics<arbitrary>, #tpu.dimension_semantics<arbitrary>], iteration_bounds = array<i64: 2, 2, 1>, scalar_prefetch = 0 : i64, scratch_operands = 4 : i64, tpu.core_type = #tpu.core_type<tc>, window_params = [{transform_indices = @transform_0, window_bounds = array<i64: 1, 8, 32>}, {transform_indices = @transform_1, window_bounds = array<i64: 1, 8, 24>}, {transform_indices = @transform_2, window_bounds = array<i64: 1, 32, 32>}, {transform_indices = @transform_3, window_bounds = array<i64: 1, 6, 32>}, {transform_indices = @transform_4, window_bounds = array<i64: 1, 32, 128>}, {transform_indices = @transform_5, window_bounds = array<i64: 1, 1, 128>}, {transform_indices = @transform_6, window_bounds = array<i64: 1, 128, 32>}, {transform_indices = @transform_7, window_bounds = array<i64: 1, 8, 32>}]} {
    %c0_i32 = arith.constant 0 : i32
    %0 = arith.cmpi eq, %arg1, %c0_i32 : i32
    %c0_i32_0 = arith.constant 0 : i32
    %1 = arith.cmpi eq, %arg2, %c0_i32_0 : i32
    %2 = arith.andi %0, %1 : i1
    %3 = arith.extui %2 : i1 to i32
    %c0_i32_1 = arith.constant 0 : i32
    %4 = arith.cmpi ne, %3, %c0_i32_1 : i32
    scf.if %4 {
      %c0_25 = arith.constant 0 : index
      %c0_26 = arith.constant 0 : index
      %c0_27 = arith.constant 0 : index
      %38 = vector.load %arg3[%c0_25, %c0_26, %c0_27] : memref<1x8x32xbf16, #tpu.memory_space<vmem>>, vector<1x8x32xbf16>
      %c0_28 = arith.constant 0 : index
      %c0_29 = arith.constant 0 : index
      %c0_30 = arith.constant 0 : index
      %39 = vector.load %arg11[%c0_28, %c0_29, %c0_30] : memref<1x8x32xbf16, #tpu.memory_space<vmem>>, vector<1x8x32xbf16>
      tpu.vector_store %arg11[%c0_28, %c0_29, %c0_30], %38 {strides = array<i32>} : memref<1x8x32xbf16, #tpu.memory_space<vmem>>, vector<1x8x32xbf16>,
    } else {
    }
    %c0_i32_2 = arith.constant 0 : i32
    %5 = arith.cmpi eq, %arg2, %c0_i32_2 : i32
    %6 = arith.extui %5 : i1 to i32
    %c0_i32_3 = arith.constant 0 : i32
    %7 = arith.cmpi ne, %6, %c0_i32_3 : i32
    scf.if %7 {
      %c0_25 = arith.constant 0 : index
      %c0_26 = arith.constant 0 : index
      %c0_27 = arith.constant 0 : index
      %38 = vector.load %arg6[%c0_25, %c0_26, %c0_27] : memref<1x6x32xf32, #tpu.memory_space<vmem>>, vector<1x6x32xf32>
      %39 = vector.shape_cast %38 : vector<1x6x32xf32> to vector<6x32xf32>
      %c0_28 = arith.constant 0 : index
      %c0_29 = arith.constant 0 : index
      %c0_30 = arith.constant 0 : index
      %40 = vector.load %arg11[%c0_28, %c0_29, %c0_30] : memref<1x8x32xbf16, #tpu.memory_space<vmem>>, vector<1x8x32xbf16>
      %41 = vector.shape_cast %40 : vector<1x8x32xbf16> to vector<1x8x4x8xbf16>
      %42 = tpu.transpose %41, [0, 2, 1, 3] : vector<1x8x4x8xbf16> -> vector<1x4x8x8xbf16>
      %43 = vector.shape_cast %42 : vector<1x4x8x8xbf16> to vector<32x8xbf16>
      %c0_31 = arith.constant 0 : index
      %c0_32 = arith.constant 0 : index
      %c0_33 = arith.constant 0 : index
      %44 = vector.load %arg4[%c0_31, %c0_32, %c0_33] : memref<1x8x24xbf16, #tpu.memory_space<vmem>>, vector<1x8x24xbf16>
      %45 = vector.shape_cast %44 : vector<1x8x24xbf16> to vector<8x24xbf16>
      %cst_34 = arith.constant dense<0.000000e+00> : vector<32x24xf32>
      %46 = tpu.matmul %43, %45, %cst_34 {dimension_numbers = #tpu.dot_dimension_numbers<[1], [0], [0], [1], [0, 0, 1, 1], [], []>} : vector<32x8xbf16>, vector<8x24xbf16>, vector<32x24xf32> -> vector<32x24xf32>
      %47 = vector.shape_cast %46 : vector<32x24xf32> to vector<4x8x24xf32>
      %48 = vector.extract_strided_slice %47 {offsets = [0, 0, 0], sizes = [4, 8, 8], strides = [1, 1, 1]} : vector<4x8x24xf32> to vector<4x8x8xf32>
      %49 = arith.truncf %48 : vector<4x8x8xf32> to vector<4x8x8xbf16>
      %50 = vector.extract_strided_slice %47 {offsets = [0, 0, 8], sizes = [4, 8, 8], strides = [1, 1, 1]} : vector<4x8x24xf32> to vector<4x8x8xf32>
      %51 = arith.truncf %50 : vector<4x8x8xf32> to vector<4x8x8xbf16>
      %52 = vector.extract_strided_slice %47 {offsets = [0, 0, 16], sizes = [4, 8, 8], strides = [1, 1, 1]} : vector<4x8x24xf32> to vector<4x8x8xf32>
      %53 = arith.truncf %52 : vector<4x8x8xf32> to vector<4x8x8xbf16>
      %c0_35 = arith.constant 0 : index
      %c0_36 = arith.constant 0 : index
      %c0_37 = arith.constant 0 : index
      %54 = vector.load %arg5[%c0_35, %c0_36, %c0_37] : memref<1x32x32xbf16, #tpu.memory_space<vmem>>, vector<1x32x32xbf16>
      %55 = vector.shape_cast %54 : vector<1x32x32xbf16> to vector<32x32xbf16>
      "tpu.trace_start"() <{level = 10 : i32, message = "nqd,nkd->nqk"}> : () -> ()
      %cst_38 = arith.constant dense<0.000000e+00> : vector<4x8x8xf32>
      %56 = tpu.matmul %49, %51, %cst_38 {dimension_numbers = #tpu.dot_dimension_numbers<[2], [2], [1], [1], [0, 0, 0, 1, 1, 1], [0], [0]>} : vector<4x8x8xbf16>, vector<4x8x8xbf16>, vector<4x8x8xf32> -> vector<4x8x8xf32>
      "tpu.trace_stop"() : () -> ()
      %cst_39 = arith.constant dense<0xFF800000> : vector<4x8xf32>
      %57 = vector.multi_reduction <maximumf>, %56, %cst_39 [2] : vector<4x8x8xf32> to vector<4x8xf32>
      %58 = vector.shape_cast %57 : vector<4x8xf32> to vector<4x8x1xf32>
      %59 = vector.broadcast %58 : vector<4x8x1xf32> to vector<4x8x8xf32>
      %60 = arith.subf %56, %59 : vector<4x8x8xf32>
      %61 = math.exp %60 : vector<4x8x8xf32>
      %cst_40 = arith.constant dense<0.000000e+00> : vector<4x8xf32>
      %62 = vector.multi_reduction <add>, %61, %cst_40 [2] : vector<4x8x8xf32> to vector<4x8xf32>
      %63 = vector.shape_cast %62 : vector<4x8xf32> to vector<4x8x1xf32>
      %64 = tpu.reciprocal %63 {approx = true} : vector<4x8x1xf32> -> vector<4x8x1xf32>
      %65 = vector.broadcast %64 : vector<4x8x1xf32> to vector<4x8x8xf32>
      %66 = arith.mulf %61, %65 : vector<4x8x8xf32>
      %67 = arith.truncf %66 : vector<4x8x8xf32> to vector<4x8x8xbf16>
      "tpu.trace_start"() <{level = 10 : i32, message = "nqk,nkd->nqd"}> : () -> ()
      %cst_41 = arith.constant dense<0.000000e+00> : vector<4x8x8xf32>
      %68 = tpu.matmul %67, %53, %cst_41 {dimension_numbers = #tpu.dot_dimension_numbers<[2], [1], [1], [2], [0, 0, 0, 1, 1, 2], [0], [0]>} : vector<4x8x8xbf16>, vector<4x8x8xbf16>, vector<4x8x8xf32> -> vector<4x8x8xf32>
      "tpu.trace_stop"() : () -> ()
      %69 = vector.shape_cast %68 : vector<4x8x8xf32> to vector<1x4x8x8xf32>
      %70 = tpu.transpose %69, [0, 2, 1, 3] : vector<1x4x8x8xf32> -> vector<1x8x4x8xf32>
      %71 = vector.shape_cast %70 : vector<1x8x4x8xf32> to vector<8x32xf32>
      %72 = arith.truncf %71 : vector<8x32xf32> to vector<8x32xbf16>
      %cst_42 = arith.constant dense<0.000000e+00> : vector<8x32xf32>
      %73 = tpu.matmul %72, %55, %cst_42 {dimension_numbers = #tpu.dot_dimension_numbers<[1], [0], [0], [1], [0, 0, 1, 1], [], []>} : vector<8x32xbf16>, vector<32x32xbf16>, vector<8x32xf32> -> vector<8x32xf32>
      %74 = vector.extract_strided_slice %39 {offsets = [0, 0], sizes = [1, 32], strides = [1, 1]} : vector<6x32xf32> to vector<1x32xf32>
      %75 = vector.broadcast %74 : vector<1x32xf32> to vector<8x32xf32>
      %76 = arith.addf %73, %75 : vector<8x32xf32>
      %77 = arith.extf %40 : vector<1x8x32xbf16> to vector<1x8x32xf32>
      %78 = vector.shape_cast %77 : vector<1x8x32xf32> to vector<8x32xf32>
      %79 = arith.addf %76, %78 : vector<8x32xf32>
      %80 = vector.extract_strided_slice %39 {offsets = [1, 0], sizes = [1, 32], strides = [1, 1]} : vector<6x32xf32> to vector<1x32xf32>
      %81 = vector.extract_strided_slice %39 {offsets = [2, 0], sizes = [1, 32], strides = [1, 1]} : vector<6x32xf32> to vector<1x32xf32>
      %cst_43 = arith.constant dense<0.000000e+00> : vector<8xf32>
      %82 = vector.multi_reduction <add>, %79, %cst_43 [1] : vector<8x32xf32> to vector<8xf32>
      %83 = vector.shape_cast %82 : vector<8xf32> to vector<8x1xf32>
      %cst_44 = arith.constant 3.200000e+01 : f32
      %84 = vector.broadcast %cst_44 : f32 to vector<8x1xf32>
      %85 = arith.divf %83, %84 : vector<8x1xf32>
      %86 = vector.broadcast %85 : vector<8x1xf32> to vector<8x32xf32>
      %87 = arith.subf %79, %86 : vector<8x32xf32>
      %88 = arith.mulf %87, %87 : vector<8x32xf32>
      %cst_45 = arith.constant dense<0.000000e+00> : vector<8xf32>
      %89 = vector.multi_reduction <add>, %88, %cst_45 [1] : vector<8x32xf32> to vector<8xf32>
      %90 = vector.shape_cast %89 : vector<8xf32> to vector<8x1xf32>
      %cst_46 = arith.constant 3.200000e+01 : f32
      %91 = vector.broadcast %cst_46 : f32 to vector<8x1xf32>
      %92 = arith.divf %90, %91 : vector<8x1xf32>
      %93 = vector.broadcast %85 : vector<8x1xf32> to vector<8x32xf32>
      %94 = arith.subf %79, %93 : vector<8x32xf32>
      %cst_47 = arith.constant 9.99999974E-6 : f32
      %95 = vector.broadcast %cst_47 : f32 to vector<8x1xf32>
      %96 = arith.addf %92, %95 : vector<8x1xf32>
      %97 = math.rsqrt %96 : vector<8x1xf32>
      %98 = vector.broadcast %97 : vector<8x1xf32> to vector<8x32xf32>
      %99 = arith.mulf %94, %98 : vector<8x32xf32>
      %100 = vector.broadcast %80 : vector<1x32xf32> to vector<8x32xf32>
      %101 = arith.mulf %99, %100 : vector<8x32xf32>
      %102 = vector.broadcast %81 : vector<1x32xf32> to vector<8x32xf32>
      %103 = arith.addf %101, %102 : vector<8x32xf32>
      %104 = vector.shape_cast %103 : vector<8x32xf32> to vector<1x8x32xf32>
      %c0_48 = arith.constant 0 : index
      %c0_49 = arith.constant 0 : index
      %c0_50 = arith.constant 0 : index
      %105 = vector.load %arg12[%c0_48, %c0_49, %c0_50] : memref<1x8x32xf32, #tpu.memory_space<vmem>>, vector<1x8x32xf32>
      tpu.vector_store %arg12[%c0_48, %c0_49, %c0_50], %104 {strides = array<i32>} : memref<1x8x32xf32, #tpu.memory_space<vmem>>, vector<1x8x32xf32>,
      %106 = arith.truncf %103 : vector<8x32xf32> to vector<8x32xbf16>
      %107 = vector.shape_cast %106 : vector<8x32xbf16> to vector<1x8x32xbf16>
      %c0_51 = arith.constant 0 : index
      %c0_52 = arith.constant 0 : index
      %c0_53 = arith.constant 0 : index
      %108 = vector.load %arg13[%c0_51, %c0_52, %c0_53] : memref<1x8x32xbf16, #tpu.memory_space<vmem>>, vector<1x8x32xbf16>
      tpu.vector_store %arg13[%c0_51, %c0_52, %c0_53], %107 {strides = array<i32>} : memref<1x8x32xbf16, #tpu.memory_space<vmem>>, vector<1x8x32xbf16>,
    } else {
    }
    %c0 = arith.constant 0 : index
    %c0_4 = arith.constant 0 : index
    %c0_5 = arith.constant 0 : index
    %8 = vector.load %arg13[%c0, %c0_4, %c0_5] : memref<1x8x32xbf16, #tpu.memory_space<vmem>>, vector<1x8x32xbf16>
    %9 = vector.shape_cast %8 : vector<1x8x32xbf16> to vector<8x32xbf16>
    %c0_6 = arith.constant 0 : index
    %c0_7 = arith.constant 0 : index
    %c0_8 = arith.constant 0 : index
    %10 = vector.load %arg7[%c0_6, %c0_7, %c0_8] : memref<1x32x128xbf16, #tpu.memory_space<vmem>>, vector<1x32x128xbf16>
    %11 = vector.shape_cast %10 : vector<1x32x128xbf16> to vector<32x128xbf16>
    %cst = arith.constant dense<0.000000e+00> : vector<8x128xf32>
    %12 = tpu.matmul %9, %11, %cst {dimension_numbers = #tpu.dot_dimension_numbers<[1], [0], [0], [1], [0, 0, 1, 1], [], []>} : vector<8x32xbf16>, vector<32x128xbf16>, vector<8x128xf32> -> vector<8x128xf32>
    %c0_9 = arith.constant 0 : index
    %c0_10 = arith.constant 0 : index
    %c0_11 = arith.constant 0 : index
    %13 = vector.load %arg8[%c0_9, %c0_10, %c0_11] : memref<1x1x128xf32, #tpu.memory_space<vmem>>, vector<1x1x128xf32>
    %14 = vector.shape_cast %13 : vector<1x1x128xf32> to vector<1x128xf32>
    %15 = vector.broadcast %14 : vector<1x128xf32> to vector<8x128xf32>
    %16 = arith.addf %12, %15 : vector<8x128xf32>
    %cst_12 = arith.constant 0.000000e+00 : f32
    %17 = vector.broadcast %cst_12 : f32 to vector<8x128xf32>
    %18 = arith.maximumf %16, %17 : vector<8x128xf32>
    %19 = arith.truncf %18 : vector<8x128xf32> to vector<8x128xbf16>
    %c0_13 = arith.constant 0 : index
    %c0_14 = arith.constant 0 : index
    %c0_15 = arith.constant 0 : index
    %20 = vector.load %arg9[%c0_13, %c0_14, %c0_15] : memref<1x128x32xbf16, #tpu.memory_space<vmem>>, vector<1x128x32xbf16>
    %21 = vector.shape_cast %20 : vector<1x128x32xbf16> to vector<128x32xbf16>
    %cst_16 = arith.constant dense<0.000000e+00> : vector<8x32xf32>
    %22 = tpu.matmul %19, %21, %cst_16 {dimension_numbers = #tpu.dot_dimension_numbers<[1], [0], [0], [1], [0, 0, 1, 1], [], []>} : vector<8x128xbf16>, vector<128x32xbf16>, vector<8x32xf32> -> vector<8x32xf32>
    %23 = vector.shape_cast %22 : vector<8x32xf32> to vector<1x8x32xf32>
    %c0_i32_17 = arith.constant 0 : i32
    %24 = arith.cmpi eq, %arg2, %c0_i32_17 : i32
    %25 = arith.extui %24 : i1 to i32
    %c0_i32_18 = arith.constant 0 : i32
    %26 = arith.cmpi ne, %25, %c0_i32_18 : i32
    scf.if %26 {
      %c0_25 = arith.constant 0 : index
      %c0_26 = arith.constant 0 : index
      %c0_27 = arith.constant 0 : index
      %38 = vector.load %arg14[%c0_25, %c0_26, %c0_27] : memref<1x8x32xf32, #tpu.memory_space<vmem>>, vector<1x8x32xf32>
      tpu.vector_store %arg14[%c0_25, %c0_26, %c0_27], %23 {strides = array<i32>} : memref<1x8x32xf32, #tpu.memory_space<vmem>>, vector<1x8x32xf32>,
    } else {
    }
    %c0_i32_19 = arith.constant 0 : i32
    %27 = arith.cmpi sgt, %arg2, %c0_i32_19 : i32
    %28 = arith.extui %27 : i1 to i32
    %c0_i32_20 = arith.constant 0 : i32
    %29 = arith.cmpi ne, %28, %c0_i32_20 : i32
    scf.if %29 {
      %c0_25 = arith.constant 0 : index
      %c0_26 = arith.constant 0 : index
      %c0_27 = arith.constant 0 : index
      %38 = vector.load %arg14[%c0_25, %c0_26, %c0_27] : memref<1x8x32xf32, #tpu.memory_space<vmem>>, vector<1x8x32xf32>
      %39 = arith.addf %38, %23 : vector<1x8x32xf32>
      %c0_28 = arith.constant 0 : index
      %c0_29 = arith.constant 0 : index
      %c0_30 = arith.constant 0 : index
      %40 = vector.load %arg14[%c0_28, %c0_29, %c0_30] : memref<1x8x32xf32, #tpu.memory_space<vmem>>, vector<1x8x32xf32>
      tpu.vector_store %arg14[%c0_28, %c0_29, %c0_30], %39 {strides = array<i32>} : memref<1x8x32xf32, #tpu.memory_space<vmem>>, vector<1x8x32xf32>,
    } else {
    }
    %c0_i32_21 = arith.constant 0 : i32
    %30 = arith.cmpi eq, %arg2, %c0_i32_21 : i32
    %31 = arith.extui %30 : i1 to i32
    %c0_i32_22 = arith.constant 0 : i32
    %32 = arith.cmpi ne, %31, %c0_i32_22 : i32
    scf.if %32 {
      %c0_25 = arith.constant 0 : index
      %c0_26 = arith.constant 0 : index
      %c0_27 = arith.constant 0 : index
      %38 = vector.load %arg6[%c0_25, %c0_26, %c0_27] : memref<1x6x32xf32, #tpu.memory_space<vmem>>, vector<1x6x32xf32>
      %39 = vector.shape_cast %38 : vector<1x6x32xf32> to vector<6x32xf32>
      %c0_28 = arith.constant 0 : index
      %c0_29 = arith.constant 0 : index
      %c0_30 = arith.constant 0 : index
      %40 = vector.load %arg14[%c0_28, %c0_29, %c0_30] : memref<1x8x32xf32, #tpu.memory_space<vmem>>, vector<1x8x32xf32>
      %41 = vector.extract_strided_slice %39 {offsets = [3, 0], sizes = [1, 32], strides = [1, 1]} : vector<6x32xf32> to vector<1x32xf32>
      %42 = vector.shape_cast %41 : vector<1x32xf32> to vector<1x1x32xf32>
      %43 = vector.broadcast %42 : vector<1x1x32xf32> to vector<1x8x32xf32>
      %44 = arith.addf %40, %43 : vector<1x8x32xf32>
      %c0_31 = arith.constant 0 : index
      %c0_32 = arith.constant 0 : index
      %c0_33 = arith.constant 0 : index
      %45 = vector.load %arg12[%c0_31, %c0_32, %c0_33] : memref<1x8x32xf32, #tpu.memory_space<vmem>>, vector<1x8x32xf32>
      %46 = arith.addf %44, %45 : vector<1x8x32xf32>
      %47 = vector.extract_strided_slice %39 {offsets = [4, 0], sizes = [1, 32], strides = [1, 1]} : vector<6x32xf32> to vector<1x32xf32>
      %48 = vector.extract_strided_slice %39 {offsets = [5, 0], sizes = [1, 32], strides = [1, 1]} : vector<6x32xf32> to vector<1x32xf32>
      %cst_34 = arith.constant dense<0.000000e+00> : vector<1x8xf32>
      %49 = vector.multi_reduction <add>, %46, %cst_34 [2] : vector<1x8x32xf32> to vector<1x8xf32>
      %50 = vector.shape_cast %49 : vector<1x8xf32> to vector<1x8x1xf32>
      %cst_35 = arith.constant 3.200000e+01 : f32
      %51 = vector.broadcast %cst_35 : f32 to vector<1x8x1xf32>
      %52 = arith.divf %50, %51 : vector<1x8x1xf32>
      %53 = vector.broadcast %52 : vector<1x8x1xf32> to vector<1x8x32xf32>
      %54 = arith.subf %46, %53 : vector<1x8x32xf32>
      %55 = arith.mulf %54, %54 : vector<1x8x32xf32>
      %cst_36 = arith.constant dense<0.000000e+00> : vector<1x8xf32>
      %56 = vector.multi_reduction <add>, %55, %cst_36 [2] : vector<1x8x32xf32> to vector<1x8xf32>
      %57 = vector.shape_cast %56 : vector<1x8xf32> to vector<1x8x1xf32>
      %cst_37 = arith.constant 3.200000e+01 : f32
      %58 = vector.broadcast %cst_37 : f32 to vector<1x8x1xf32>
      %59 = arith.divf %57, %58 : vector<1x8x1xf32>
      %60 = vector.broadcast %52 : vector<1x8x1xf32> to vector<1x8x32xf32>
      %61 = arith.subf %46, %60 : vector<1x8x32xf32>
      %cst_38 = arith.constant 9.99999974E-6 : f32
      %62 = vector.broadcast %cst_38 : f32 to vector<1x8x1xf32>
      %63 = arith.addf %59, %62 : vector<1x8x1xf32>
      %64 = math.rsqrt %63 : vector<1x8x1xf32>
      %65 = vector.broadcast %64 : vector<1x8x1xf32> to vector<1x8x32xf32>
      %66 = arith.mulf %61, %65 : vector<1x8x32xf32>
      %67 = vector.shape_cast %47 : vector<1x32xf32> to vector<1x1x32xf32>
      %68 = vector.broadcast %67 : vector<1x1x32xf32> to vector<1x8x32xf32>
      %69 = arith.mulf %66, %68 : vector<1x8x32xf32>
      %70 = vector.shape_cast %48 : vector<1x32xf32> to vector<1x1x32xf32>
      %71 = vector.broadcast %70 : vector<1x1x32xf32> to vector<1x8x32xf32>
      %72 = arith.addf %69, %71 : vector<1x8x32xf32>
      %73 = arith.truncf %72 : vector<1x8x32xf32> to vector<1x8x32xbf16>
      %c0_39 = arith.constant 0 : index
      %c0_40 = arith.constant 0 : index
      %c0_41 = arith.constant 0 : index
      %74 = vector.load %arg11[%c0_39, %c0_40, %c0_41] : memref<1x8x32xbf16, #tpu.memory_space<vmem>>, vector<1x8x32xbf16>
      tpu.vector_store %arg11[%c0_39, %c0_40, %c0_41], %73 {strides = array<i32>} : memref<1x8x32xbf16, #tpu.memory_space<vmem>>, vector<1x8x32xbf16>,
    } else {
    }
    %c0_i32_23 = arith.constant 0 : i32
    %33 = arith.cmpi eq, %arg2, %c0_i32_23 : i32
    %c1_i32 = arith.constant 1 : i32
    %34 = arith.cmpi eq, %arg1, %c1_i32 : i32
    %35 = arith.andi %33, %34 : i1
    %36 = arith.extui %35 : i1 to i32
    %c0_i32_24 = arith.constant 0 : i32
    %37 = arith.cmpi ne, %36, %c0_i32_24 : i32
    scf.if %37 {
      %c0_25 = arith.constant 0 : index
      %c0_26 = arith.constant 0 : index
      %c0_27 = arith.constant 0 : index
      %38 = vector.load %arg11[%c0_25, %c0_26, %c0_27] : memref<1x8x32xbf16, #tpu.memory_space<vmem>>, vector<1x8x32xbf16>
      %c0_28 = arith.constant 0 : index
      %c0_29 = arith.constant 0 : index
      %c0_30 = arith.constant 0 : index
      %39 = vector.load %arg10[%c0_28, %c0_29, %c0_30] : memref<1x8x32xbf16, #tpu.memory_space<vmem>>, vector<1x8x32xbf16>
      tpu.vector_store %arg10[%c0_28, %c0_29, %c0_30], %38 {strides = array<i32>} : memref<1x8x32xbf16, #tpu.memory_space<vmem>>, vector<1x8x32xbf16>,
    } else {
    }
    return
  }
  func.func @transform_0(%arg0: i32, %arg1: i32, %arg2: i32) -> (i32, i32, i32) {
    %c0_i32 = arith.constant 0 : i32
    %c0_i32_0 = arith.constant 0 : i32
    %c0_i32_1 = arith.constant 0 : i32
    return %arg0, %c0_i32, %c0_i32_0 : i32, i32, i32
  }
  func.func @transform_1(%arg0: i32, %arg1: i32, %arg2: i32) -> (i32, i32, i32) {
    %c0_i32 = arith.constant 0 : i32
    %c0_i32_0 = arith.constant 0 : i32
    %c0_i32_1 = arith.constant 0 : i32
    return %arg1, %c0_i32, %c0_i32_0 : i32, i32, i32
  }
  func.func @transform_2(%arg0: i32, %arg1: i32, %arg2: i32) -> (i32, i32, i32) {
    %c0_i32 = arith.constant 0 : i32
    %c0_i32_0 = arith.constant 0 : i32
    %c0_i32_1 = arith.constant 0 : i32
    return %arg1, %c0_i32, %c0_i32_0 : i32, i32, i32
  }
  func.func @transform_3(%arg0: i32, %arg1: i32, %arg2: i32) -> (i32, i32, i32) {
    %c0_i32 = arith.constant 0 : i32
    %c0_i32_0 = arith.constant 0 : i32
    %c0_i32_1 = arith.constant 0 : i32
    return %arg1, %c0_i32, %c0_i32_0 : i32, i32, i32
  }
  func.func @transform_4(%arg0: i32, %arg1: i32, %arg2: i32) -> (i32, i32, i32) {
    %c0_i32 = arith.constant 0 : i32
    %c0_i32_0 = arith.constant 0 : i32
    return %arg1, %c0_i32, %arg2 : i32, i32, i32
  }
  func.func @transform_5(%arg0: i32, %arg1: i32, %arg2: i32) -> (i32, i32, i32) {
    %c0_i32 = arith.constant 0 : i32
    %c0_i32_0 = arith.constant 0 : i32
    return %arg1, %c0_i32, %arg2 : i32, i32, i32
  }
  func.func @transform_6(%arg0: i32, %arg1: i32, %arg2: i32) -> (i32, i32, i32) {
    %c0_i32 = arith.constant 0 : i32
    %c0_i32_0 = arith.constant 0 : i32
    return %arg1, %arg2, %c0_i32 : i32, i32, i32
  }
  func.func @transform_7(%arg0: i32, %arg1: i32, %arg2: i32) -> (i32, i32, i32) {
    %c0_i32 = arith.constant 0 : i32
    %c0_i32_0 = arith.constant 0 : i32
    %c0_i32_1 = arith.constant 0 : i32
    return %arg0, %c0_i32, %c0_i32_0 : i32, i32, i32
  }
}

</mosaic_0001>

<llo_original>
// kernel: tpu_custom_call.1
$region0: #{tpu_custom_call.1}
  #allocation0 [shape = 'u32[]', space=smem, size = 0x4, offset = 0x4, fixed_abs, tag = 'smem constant byte address 0x4 - core index']
  #allocation1 [shape = 'u32[144,128]{1,0:T(1,128)}', space=vmem, size = 0x12000, scoped, tag = 'internal scratch']
  #allocation2 [shape = 'bf16[1,8,32]{2,1,0:T(8,128)(2,1)}', space=vmem, size = 0x800, scoped, tag = 'scratch operand']
  #allocation3 [shape = 'f32[1,8,32]{2,1,0:T(8,128)}', space=vmem, size = 0x1000, scoped, tag = 'scratch operand']
  #allocation4 [shape = 'bf16[1,8,32]{2,1,0:T(8,128)(2,1)}', space=vmem, size = 0x800, scoped, tag = 'scratch operand']
  #allocation5 [shape = 'f32[1,8,32]{2,1,0:T(8,128)}', space=vmem, size = 0x1000, scoped, tag = 'scratch operand']
  %s0 = inlined_call_operand.vmem [shape: bf16[2,8,32], index: 0, kind: input, shape index: {}]
  %s1 = inlined_call_operand.vmem [shape: bf16[2,8,24], index: 1, kind: input, shape index: {}]
  %s2 = inlined_call_operand.vmem [shape: bf16[2,32,32], index: 2, kind: input, shape index: {}]
  %s3 = inlined_call_operand.vmem [shape: f32[2,6,32], index: 3, kind: input, shape index: {}]
  %s4 = inlined_call_operand.vmem [shape: bf16[2,32,128], index: 4, kind: input, shape index: {}]
  %s5 = inlined_call_operand.vmem [shape: f32[2,1,128], index: 5, kind: input, shape index: {}]
  %s6 = inlined_call_operand.vmem [shape: bf16[2,128,32], index: 6, kind: input, shape index: {}]
  %s7 = inlined_call_operand.hbm [shape: bf16[2,8,32], index: 7, kind: output, shape index: {}]
  %s8 = sld [smem:[#allocation0]]
  $region85: #{tpu_custom_call.1} parent=0
    _
  %s10 = ssub.s32 1, %s8
  %s11 = scalar_select 0, %s10, %s8
  $region1: #{tpu_custom_call.1} parent=0
    #allocation6 [shape = 'u8[4096]{0}', space=vmem, size = 0x1000, scoped, tag = 'output window, operand 0']
    #allocation7 [shape = 's32[2]{0}', space=sflag, size = 0x8, scoped, tag = 'scoped memory for tpu_custom_call.1']
    %12 = vsyncpa [#allocation7], 0
    %s13 = scalar_lea.sflag [#allocation7], 1
    %14 = vsyncpa %s13, 0
    loop: start=0, step=1, limit=6
    $region2: #{tpu_custom_call.1} parent=1 // loop_pre_header
      _
    $region3: #{tpu_custom_call.1} parent=1 // loop_header
      %s16 = sphi 0, %s20
      %p17 = scmp.ge.s32.totalorder %s16, 6
      %s23 = sphi 0, %s42
      %s24 = sphi 0, %s38
      %s25 = sphi 0, %s34
      %s26 = sphi 0, %s23
      %s27 = sphi 0, %s24
      %s28 = sphi 0, %s25
      %s29 = sphi 0, %s26
      %s30 = sphi 0, %s27
      %s31 = sphi 0, %s28
      %s45 = sphi 0, %s47
      %s48 = sphi 0, %s45
      %s49 = sphi 0, %s48
      %s65 = sphi 0, %s49
      %s71 = sphi 0, %s73
      %s74 = sphi 0, %s71
      %s75 = sphi 0, %s74
      %s91 = sphi 0, %s75
      %s97 = sphi 0, %s99
      %s100 = sphi 0, %s97
      %s101 = sphi 0, %s100
      %s117 = sphi 0, %s101
      %s123 = sphi 0, %s125
      %s126 = sphi 0, %s123
      %s127 = sphi 0, %s126
      %s143 = sphi 0, %s127
      %s151 = sphi 0, %s153
      %s154 = sphi 0, %s151
      %s155 = sphi 0, %s154
      %s171 = sphi 0, %s155
      %s179 = sphi 0, %s181
      %s182 = sphi 0, %s179
      %s183 = sphi 0, %s182
      %s199 = sphi 0, %s183
      %s207 = sphi 0, %s209
      %s210 = sphi 0, %s207
      %s211 = sphi 0, %s210
      %s227 = sphi 0, %s211
      %s233 = sphi 0, %s235
      %s236 = sphi 0, %s233
      %s237 = sphi 0, %s236
      %s253 = sphi 0, %s237
    $region4: #{tpu_custom_call.1} parent=1 // loop_header_branch
      %19 = sbr.rel (%p17) target = $region8
    $region5: #{tpu_custom_call.1} parent=1 // loop_body
      %s21 = ssub.s32 %s16, 1
      %s22 = ssub.s32 %s16, 2
      %s32 = sadd.s32 1, %s25
      %p33 = scmp.ge.s32.totalorder %s32, 1
      %s34 = scalar_select %p33, 0, %s32
      %s35 = sadd.s32 1, %s24
      %s36 = scalar_select %p33, %s35, %s24
      %p37 = scmp.ge.s32.totalorder %s36, 2
      %s38 = scalar_select %p37, 0, %s36
      %s39 = sadd.s32 1, %s23
      %s40 = scalar_select %p37, %s39, %s23
      %p41 = scmp.ge.s32.totalorder %s40, 2
      %s42 = scalar_select %p41, 0, %s40
      %s43 = ssub.s32 %s23, %s42
      %p44 = scmp.eq.s32.totalorder %s43, 0
      %s46 = sadd.s32 %s45, 1
      %s47 = scalar_select %p44, %s45, %s46
      %p50 = pneg %p44
      %p51 = scmp.eq.s32.totalorder %s16, 3
      %p52 = por %p50, %p51
      %p53 = scmp.ne.s32.totalorder %s45, %s48
      %p54 = scmp.eq.s32.totalorder %s16, 0
      %p55 = por %p53, %p54
      %p56 = scmp.ne.s32.totalorder %s45, %s48
      %p57 = scmp.eq.s32.totalorder %s21, 3
      %p58 = por %p56, %p57
      %p59 = scmp.ne.s32.totalorder %s48, %s49
      %p60 = scmp.eq.s32.totalorder %s21, 0
      %p61 = por %p59, %p60
      %p62 = scmp.ne.s32.totalorder %s48, %s49
      %p63 = scmp.eq.s32.totalorder %s22, 3
      %p64 = por %p62, %p63
      %p66 = scmp.ne.s32.totalorder %s49, %s65
      %p67 = scmp.eq.s32.totalorder %s22, 0
      %p68 = por %p66, %p67
      %s69 = ssub.s32 %s24, %s38
      %p70 = scmp.eq.s32.totalorder %s69, 0
      %s72 = sadd.s32 %s71, 1
      %s73 = scalar_select %p70, %s71, %s72
      %p76 = pneg %p70
      %p77 = scmp.eq.s32.totalorder %s16, 3
      %p78 = por %p76, %p77
      %p79 = scmp.ne.s32.totalorder %s71, %s74
      %p80 = scmp.eq.s32.totalorder %s16, 0
      %p81 = por %p79, %p80
      %p82 = scmp.ne.s32.totalorder %s71, %s74
      %p83 = scmp.eq.s32.totalorder %s21, 3
      %p84 = por %p82, %p83
      %p85 = scmp.ne.s32.totalorder %s74, %s75
      %p86 = scmp.eq.s32.totalorder %s21, 0
      %p87 = por %p85, %p86
      %p88 = scmp.ne.s32.totalorder %s74, %s75
      %p89 = scmp.eq.s32.totalorder %s22, 3
      %p90 = por %p88, %p89
      %p92 = scmp.ne.s32.totalorder %s75, %s91
      %p93 = scmp.eq.s32.totalorder %s22, 0
      %p94 = por %p92, %p93
      %s95 = ssub.s32 %s24, %s38
      %p96 = scmp.eq.s32.totalorder %s95, 0
      %s98 = sadd.s32 %s97, 1
      %s99 = scalar_select %p96, %s97, %s98
      %p102 = pneg %p96
      %p103 = scmp.eq.s32.totalorder %s16, 3
      %p104 = por %p102, %p103
      %p105 = scmp.ne.s32.totalorder %s97, %s100
      %p106 = scmp.eq.s32.totalorder %s16, 0
      %p107 = por %p105, %p106
      %p108 = scmp.ne.s32.totalorder %s97, %s100
      %p109 = scmp.eq.s32.totalorder %s21, 3
      %p110 = por %p108, %p109
      %p111 = scmp.ne.s32.totalorder %s100, %s101
      %p112 = scmp.eq.s32.totalorder %s21, 0
      %p113 = por %p111, %p112
      %p114 = scmp.ne.s32.totalorder %s100, %s101
      %p115 = scmp.eq.s32.totalorder %s22, 3
      %p116 = por %p114, %p115
      %p118 = scmp.ne.s32.totalorder %s101, %s117
      %p119 = scmp.eq.s32.totalorder %s22, 0
      %p120 = por %p118, %p119
      %s121 = ssub.s32 %s24, %s38
      %p122 = scmp.eq.s32.totalorder %s121, 0
      %s124 = sadd.s32 %s123, 1
      %s125 = scalar_select %p122, %s123, %s124
      %p128 = pneg %p122
      %p129 = scmp.eq.s32.totalorder %s16, 3
      %p130 = por %p128, %p129
      %p131 = scmp.ne.s32.totalorder %s123, %s126
      %p132 = scmp.eq.s32.totalorder %s16, 0
      %p133 = por %p131, %p132
      %p134 = scmp.ne.s32.totalorder %s123, %s126
      %p135 = scmp.eq.s32.totalorder %s21, 3
      %p136 = por %p134, %p135
      %p137 = scmp.ne.s32.totalorder %s126, %s127
      %p138 = scmp.eq.s32.totalorder %s21, 0
      %p139 = por %p137, %p138
      %p140 = scmp.ne.s32.totalorder %s126, %s127
      %p141 = scmp.eq.s32.totalorder %s22, 3
      %p142 = por %p140, %p141
      %p144 = scmp.ne.s32.totalorder %s127, %s143
      %p145 = scmp.eq.s32.totalorder %s22, 0
      %p146 = por %p144, %p145
      %s147 = ssub.s32 %s24, %s38
      %s148 = ssub.s32 %s25, %s34
      %s149 = sor.u32 %s147, %s148
      %p150 = scmp.eq.s32.totalorder %s149, 0
      %s152 = sadd.s32 %s151, 1
      %s153 = scalar_select %p150, %s151, %s152
      %p156 = pneg %p150
      %p157 = scmp.eq.s32.totalorder %s16, 3
      %p158 = por %p156, %p157
      %p159 = scmp.ne.s32.totalorder %s151, %s154
      %p160 = scmp.eq.s32.totalorder %s16, 0
      %p161 = por %p159, %p160
      %p162 = scmp.ne.s32.totalorder %s151, %s154
      %p163 = scmp.eq.s32.totalorder %s21, 3
      %p164 = por %p162, %p163
      %p165 = scmp.ne.s32.totalorder %s154, %s155
      %p166 = scmp.eq.s32.totalorder %s21, 0
      %p167 = por %p165, %p166
      %p168 = scmp.ne.s32.totalorder %s154, %s155
      %p169 = scmp.eq.s32.totalorder %s22, 3
      %p170 = por %p168, %p169
      %p172 = scmp.ne.s32.totalorder %s155, %s171
      %p173 = scmp.eq.s32.totalorder %s22, 0
      %p174 = por %p172, %p173
      %s175 = ssub.s32 %s24, %s38
      %s176 = ssub.s32 %s25, %s34
      %s177 = sor.u32 %s175, %s176
      %p178 = scmp.eq.s32.totalorder %s177, 0
      %s180 = sadd.s32 %s179, 1
      %s181 = scalar_select %p178, %s179, %s180
      %p184 = pneg %p178
      %p185 = scmp.eq.s32.totalorder %s16, 3
      %p186 = por %p184, %p185
      %p187 = scmp.ne.s32.totalorder %s179, %s182
      %p188 = scmp.eq.s32.totalorder %s16, 0
      %p189 = por %p187, %p188
      %p190 = scmp.ne.s32.totalorder %s179, %s182
      %p191 = scmp.eq.s32.totalorder %s21, 3
      %p192 = por %p190, %p191
      %p193 = scmp.ne.s32.totalorder %s182, %s183
      %p194 = scmp.eq.s32.totalorder %s21, 0
      %p195 = por %p193, %p194
      %p196 = scmp.ne.s32.totalorder %s182, %s183
      %p197 = scmp.eq.s32.totalorder %s22, 3
      %p198 = por %p196, %p197
      %p200 = scmp.ne.s32.totalorder %s183, %s199
      %p201 = scmp.eq.s32.totalorder %s22, 0
      %p202 = por %p200, %p201
      %s203 = ssub.s32 %s24, %s38
      %s204 = ssub.s32 %s25, %s34
      %s205 = sor.u32 %s203, %s204
      %p206 = scmp.eq.s32.totalorder %s205, 0
      %s208 = sadd.s32 %s207, 1
      %s209 = scalar_select %p206, %s207, %s208
      %p212 = pneg %p206
      %p213 = scmp.eq.s32.totalorder %s16, 3
      %p214 = por %p212, %p213
      %p215 = scmp.ne.s32.totalorder %s207, %s210
      %p216 = scmp.eq.s32.totalorder %s16, 0
      %p217 = por %p215, %p216
      %p218 = scmp.ne.s32.totalorder %s207, %s210
      %p219 = scmp.eq.s32.totalorder %s21, 3
      %p220 = por %p218, %p219
      %p221 = scmp.ne.s32.totalorder %s210, %s211
      %p222 = scmp.eq.s32.totalorder %s21, 0
      %p223 = por %p221, %p222
      %p224 = scmp.ne.s32.totalorder %s210, %s211
      %p225 = scmp.eq.s32.totalorder %s22, 3
      %p226 = por %p224, %p225
      %p228 = scmp.ne.s32.totalorder %s211, %s227
      %p229 = scmp.eq.s32.totalorder %s22, 0
      %p230 = por %p228, %p229
      %s231 = ssub.s32 %s23, %s42
      %p232 = scmp.eq.s32.totalorder %s231, 0
      %s234 = sadd.s32 %s233, 1
      %s235 = scalar_select %p232, %s233, %s234
      %p238 = pneg %p232
      %p239 = scmp.eq.s32.totalorder %s16, 3
      %p240 = por %p238, %p239
      %p241 = scmp.ne.s32.totalorder %s233, %s236
      %p242 = scmp.eq.s32.totalorder %s16, 0
      %p243 = por %p241, %p242
      %p244 = scmp.ne.s32.totalorder %s233, %s236
      %p245 = scmp.eq.s32.totalorder %s21, 3
      %p246 = por %p244, %p245
      %p247 = scmp.ne.s32.totalorder %s236, %s237
      %p248 = scmp.eq.s32.totalorder %s21, 0
      %p249 = por %p247, %p248
      %p250 = scmp.ne.s32.totalorder %s236, %s237
      %p251 = scmp.eq.s32.totalorder %s22, 3
      %p252 = por %p250, %p251
      %p254 = scmp.ne.s32.totalorder %s237, %s253
      %p255 = scmp.eq.s32.totalorder %s22, 0
      %p256 = por %p254, %p255
      %p257 = scmp.le.s32.totalorder 1, %s16
      %p258 = scmp.lt.s32.totalorder %s16, 5
      %p259 = pnand %p257, %p258
      %p260 = pneg %p259
      // Predicated region
      $region9: #{tpu_custom_call.1} parent=5 // pred_check
        _
      $region10: #{tpu_custom_call.1} parent=5 // pred_check_branch
        %262 = sbr.rel (%p259) target = $region12
      $region11: #{tpu_custom_call.1} parent=5 // pred_region
        %s263 = ssub.s32 %s16, 1
      $region12: #{tpu_custom_call.1} parent=5 // pred_fallthru
        _
      %p264 = scmp.lt.s32.totalorder %s16, 4
      // Predicated region
      $region13: #{tpu_custom_call.1} parent=5 // pred_check
        %p265 = pneg %p264
      $region14: #{tpu_custom_call.1} parent=5 // pred_check_branch
        %267 = sbr.rel (%p265) target = $region16
      $region15: #{tpu_custom_call.1} parent=5 // pred_region
        // Predicated region
        $region17: #{tpu_custom_call.1} parent=15 // pred_check
          %p268 = pneg %p55
        $region18: #{tpu_custom_call.1} parent=15 // pred_check_branch
          %270 = sbr.rel (%p268) target = $region20
        $region19: #{tpu_custom_call.1} parent=15 // pred_region
          %p271 = scmp.lt.s32.totalorder %s23, 1
          %s272 = scalar_select %p271, %s23, 1
          %s273 = smul.addr %s272, 4
          %s274 = scalar_lea.vmem %s0, %s273
        $region20: #{tpu_custom_call.1} parent=15 // pred_fallthru
          _
        // Predicated region
        $region21: #{tpu_custom_call.1} parent=15 // pred_check
          %p275 = pneg %p81
        $region22: #{tpu_custom_call.1} parent=15 // pred_check_branch
          %277 = sbr.rel (%p275) target = $region24
        $region23: #{tpu_custom_call.1} parent=15 // pred_region
          %p278 = scmp.lt.s32.totalorder %s24, 1
          %s279 = scalar_select %p278, %s24, 1
          %s280 = smul.addr %s279, 4
          %s281 = scalar_lea.vmem %s1, %s280
        $region24: #{tpu_custom_call.1} parent=15 // pred_fallthru
          _
        // Predicated region
        $region25: #{tpu_custom_call.1} parent=15 // pred_check
          %p282 = pneg %p107
        $region26: #{tpu_custom_call.1} parent=15 // pred_check_branch
          %284 = sbr.rel (%p282) target = $region28
        $region27: #{tpu_custom_call.1} parent=15 // pred_region
          %p285 = scmp.lt.s32.totalorder %s24, 1
          %s286 = scalar_select %p285, %s24, 1
          %s287 = smul.addr %s286, 4
          %s288 = smul.addr %s287, 4
          %s289 = scalar_lea.vmem %s2, %s288
        $region28: #{tpu_custom_call.1} parent=15 // pred_fallthru
          _
        // Predicated region
        $region29: #{tpu_custom_call.1} parent=15 // pred_check
          %p290 = pneg %p133
        $region30: #{tpu_custom_call.1} parent=15 // pred_check_branch
          %292 = sbr.rel (%p290) target = $region32
        $region31: #{tpu_custom_call.1} parent=15 // pred_region
          %p293 = scmp.lt.s32.totalorder %s24, 1
          %s294 = scalar_select %p293, %s24, 1
          %s295 = smul.addr %s294, 8
          %s296 = scalar_lea.vmem %s3, %s295
        $region32: #{tpu_custom_call.1} parent=15 // pred_fallthru
          _
        // Predicated region
        $region33: #{tpu_custom_call.1} parent=15 // pred_check
          %p297 = pneg %p161
        $region34: #{tpu_custom_call.1} parent=15 // pred_check_branch
          %299 = sbr.rel (%p297) target = $region36
        $region35: #{tpu_custom_call.1} parent=15 // pred_region
          %p300 = scmp.lt.s32.totalorder %s24, 1
          %s301 = scalar_select %p300, %s24, 1
          %p302 = scmp.lt.s32.totalorder %s25, 0
          %s303 = scalar_select %p302, %s25, 0
          %s304 = smul.addr %s301, 4
          %s305 = sadd.s32 %s303, %s304
          %s306 = smul.addr %s305, 4
          %s307 = scalar_lea.vmem %s4, %s306
        $region36: #{tpu_custom_call.1} parent=15 // pred_fallthru
          _
        // Predicated region
        $region37: #{tpu_custom_call.1} parent=15 // pred_check
          %p308 = pneg %p189
        $region38: #{tpu_custom_call.1} parent=15 // pred_check_branch
          %310 = sbr.rel (%p308) target = $region40
        $region39: #{tpu_custom_call.1} parent=15 // pred_region
          %p311 = scmp.lt.s32.totalorder %s24, 1
          %s312 = scalar_select %p311, %s24, 1
          %p313 = scmp.lt.s32.totalorder %s25, 0
          %s314 = scalar_select %p313, %s25, 0
          %s315 = sadd.s32 %s314, %s312
          %s316 = scalar_lea.vmem %s5, %s315
        $region40: #{tpu_custom_call.1} parent=15 // pred_fallthru
          _
        // Predicated region
        $region41: #{tpu_custom_call.1} parent=15 // pred_check
          %p317 = pneg %p217
        $region42: #{tpu_custom_call.1} parent=15 // pred_check_branch
          %319 = sbr.rel (%p317) target = $region44
        $region43: #{tpu_custom_call.1} parent=15 // pred_region
          %s320 = smul.u32 16, %s25
          %p321 = scmp.lt.s32.totalorder %s24, 1
          %s322 = scalar_select %p321, %s24, 1
          %p323 = scmp.lt.s32.totalorder %s320, 15
          %s324 = scalar_select %p323, %s320, 15
          %s325 = smul.addr %s322, 16
          %s326 = sadd.s32 %s324, %s325
          %s327 = smul.addr %s326, 4
          %s328 = scalar_lea.vmem %s6, %s327
          %s329 = smul.u32 16, %s25
        $region44: #{tpu_custom_call.1} parent=15 // pred_fallthru
          _
      $region16: #{tpu_custom_call.1} parent=5 // pred_fallthru
        _
      %p330 = scmp.le.s32.totalorder 1, %s16
      %p331 = scmp.lt.s32.totalorder %s16, 5
      %p332 = pnand %p330, %p331
      %p333 = pneg %p332
      // Predicated region
      $region45: #{tpu_custom_call.1} parent=5 // pred_check
        _
      $region46: #{tpu_custom_call.1} parent=5 // pred_check_branch
        %335 = sbr.rel (%p332) target = $region48
      $region47: #{tpu_custom_call.1} parent=5 // pred_region
        %s336 = ssub.s32 %s16, 1
        %p337 = scmp.lt.s32.totalorder %s26, 1
        %s338 = scalar_select %p337, %s26, 1
        %s339 = smul.addr %s338, 4
        %s340 = scalar_lea.vmem %s0, %s339
        %p341 = pneg %p61
        %p342 = pneg %p58
        %p343 = scmp.lt.s32.totalorder %s27, 1
        %s344 = scalar_select %p343, %s27, 1
        %s345 = smul.addr %s344, 4
        %s346 = scalar_lea.vmem %s1, %s345
        %p347 = pneg %p87
        %p348 = pneg %p84
        %p349 = scmp.lt.s32.totalorder %s27, 1
        %s350 = scalar_select %p349, %s27, 1
        %s351 = smul.addr %s350, 4
        %s352 = smul.addr %s351, 4
        %s353 = scalar_lea.vmem %s2, %s352
        %p354 = pneg %p113
        %p355 = pneg %p110
        %p356 = scmp.lt.s32.totalorder %s27, 1
        %s357 = scalar_select %p356, %s27, 1
        %s358 = smul.addr %s357, 8
        %s359 = scalar_lea.vmem %s3, %s358
        %p360 = pneg %p139
        %p361 = pneg %p136
        %p362 = scmp.lt.s32.totalorder %s27, 1
        %s363 = scalar_select %p362, %s27, 1
        %p364 = scmp.lt.s32.totalorder %s28, 0
        %s365 = scalar_select %p364, %s28, 0
        %s366 = smul.addr %s363, 4
        %s367 = sadd.s32 %s365, %s366
        %s368 = smul.addr %s367, 4
        %s369 = scalar_lea.vmem %s4, %s368
        %p370 = pneg %p167
        %p371 = pneg %p164
        %p372 = scmp.lt.s32.totalorder %s27, 1
        %s373 = scalar_select %p372, %s27, 1
        %p374 = scmp.lt.s32.totalorder %s28, 0
        %s375 = scalar_select %p374, %s28, 0
        %s376 = sadd.s32 %s375, %s373
        %s377 = scalar_lea.vmem %s5, %s376
        %p378 = pneg %p195
        %p379 = pneg %p192
        %s380 = smul.u32 16, %s28
        %p381 = scmp.lt.s32.totalorder %s27, 1
        %s382 = scalar_select %p381, %s27, 1
        %p383 = scmp.lt.s32.totalorder %s380, 15
        %s384 = scalar_select %p383, %s380, 15
        %s385 = smul.addr %s382, 16
        %s386 = sadd.s32 %s384, %s385
        %s387 = smul.addr %s386, 4
        %s388 = scalar_lea.vmem %s6, %s387
        %p389 = pneg %p223
        %p390 = pneg %p220
        %p391 = pneg %p249
        %p392 = pneg %p246
        %s393 = sand.u32 %s236, 1
        %s394 = scalar_lea.sflag [#allocation7], %s393
        %s395 = sand.u32 %s236, 1
        %s396 = smul.addr %s395, 4
        %s397 = scalar_lea.vmem [#allocation6], %s396
        %p398 = scmp.lt.s32.totalorder %s26, 1
        %s399 = scalar_select %p398, %s26, 1
        %s400 = smul.addr %s399, 4
        %s401 = scalar_lea.vmem %s0, %s400
        %p402 = scmp.lt.s32.totalorder %s27, 1
        %s403 = scalar_select %p402, %s27, 1
        %s404 = smul.addr %s403, 4
        %s405 = scalar_lea.vmem %s1, %s404
        %p406 = scmp.lt.s32.totalorder %s27, 1
        %s407 = scalar_select %p406, %s27, 1
        %s408 = smul.addr %s407, 4
        %s409 = smul.addr %s408, 4
        %s410 = scalar_lea.vmem %s2, %s409
        %p411 = scmp.lt.s32.totalorder %s27, 1
        %s412 = scalar_select %p411, %s27, 1
        %s413 = smul.addr %s412, 8
        %s414 = scalar_lea.vmem %s3, %s413
        %p415 = scmp.lt.s32.totalorder %s27, 1
        %s416 = scalar_select %p415, %s27, 1
        %p417 = scmp.lt.s32.totalorder %s28, 0
        %s418 = scalar_select %p417, %s28, 0
        %s419 = smul.addr %s416, 4
        %s420 = sadd.s32 %s418, %s419
        %s421 = smul.addr %s420, 4
        %s422 = scalar_lea.vmem %s4, %s421
        %p423 = scmp.lt.s32.totalorder %s27, 1
        %s424 = scalar_select %p423, %s27, 1
        %p425 = scmp.lt.s32.totalorder %s28, 0
        %s426 = scalar_select %p425, %s28, 0
        %s427 = sadd.s32 %s426, %s424
        %s428 = scalar_lea.vmem %s5, %s427
        %s429 = smul.u32 16, %s28
        %p430 = scmp.lt.s32.totalorder %s27, 1
        %s431 = scalar_select %p430, %s27, 1
        %p432 = scmp.lt.s32.totalorder %s429, 15
        %s433 = scalar_select %p432, %s429, 15
        %s434 = smul.addr %s431, 16
        %s435 = sadd.s32 %s433, %s434
        %s436 = smul.addr %s435, 4
        %s437 = scalar_lea.vmem %s6, %s436
        %s438 = smul.u32 16, %s28
        %p440 = scmp.eq.s32.totalorder %s27, 0
        %p441 = scmp.eq.s32.totalorder %s28, 0
        %p442 = pnand %p440, %p441
        %p443 = pneg %p442
        // Predicated region
        $region49: #{tpu_custom_call.1} parent=47 // pred_check
          _
        $region50: #{tpu_custom_call.1} parent=47 // pred_check_branch
          %445 = sbr.rel (%p442) target = $region52
        $region51: #{tpu_custom_call.1} parent=47 // pred_region
          %v446 = vld [vmem:[%s401] sm:$0xf]
          %vm447 = vcmask 257024
          %448 = vst.msk [vmem:[#allocation2] sm:$0xf] %vm447, %v446
        $region52: #{tpu_custom_call.1} parent=47 // pred_fallthru
          _
        // Predicated region
        $region53: #{tpu_custom_call.1} parent=47 // pred_check
          %p449 = pneg %p441
        $region54: #{tpu_custom_call.1} parent=47 // pred_check_branch
          %451 = sbr.rel (%p449) target = $region56
        $region55: #{tpu_custom_call.1} parent=47 // pred_region
          %v452 = vld [vmem:[%s414] sm:$0x3f]
          %v453 = vld [vmem:[#allocation2] sm:$0xf]
          %455 = vrot.lane.b32.xlu0 %v453, 120
          %v456 = vpop.permute.xlu0 %455
          %457 = vrot.lane.b32.xlu0 %v453, 112
          %v458 = vpop.permute.xlu0 %457
          %459 = vrot.lane.b32.xlu0 %v453, 104
          %v460 = vpop.permute.xlu0 %459
          %v463 = vpack.i.b16 %v456, %v453
          %v464 = vshrl.u32 %v453, 16
          %v465 = vshrl.u32 %v456, 16
          %v466 = vpack.i.b16 %v465, %v464
          %v469 = vpack.i.b16 %v460, %v458
          %v470 = vshrl.u32 %v458, 16
          %v471 = vshrl.u32 %v460, 16
          %v472 = vpack.i.b16 %v471, %v470
          %v475 = vunpack.c.l.s4 1983009808
          %v476 = vunpack.c.0.s8 %v475
          %v477 = vlaneseq
          %v478 = vshrl.u32 %v477, 7
          %v479 = vsub.s32 %v476, %v478
          %v480 = vrot.slane %v463, %v479
          %v483 = vunpack.c.l.s4 1983009808
          %v484 = vunpack.c.0.s8 %v483
          %v485 = vlaneseq
          %v486 = vshrl.u32 %v485, 7
          %v487 = vsub.s32 %v484, %v486
          %v488 = vrot.slane %v469, %v487
          %v489 = vcombine.low %v480, %v488
          %v490 = vcombine.high %v480, %v488
          %v492 = vunpack.c.l.s4 1934713408
          %v493 = vunpack.c.0.s8 %v492
          %v494 = vlaneseq
          %v495 = vshrl.u32 %v494, 7
          %v496 = vsub.s32 %v493, %v495
          %v497 = vrot.slane %v489, %v496
          %v499 = vunpack.c.l.s4 1934713408
          %v500 = vunpack.c.0.s8 %v499
          %v501 = vlaneseq
          %v502 = vshrl.u32 %v501, 7
          %v503 = vsub.s32 %v500, %v502
          %v504 = vrot.slane %v490, %v503
          %v505 = vcombine.high %v497, 0
          %v506 = vcombine.high %v504, 0
          %v509 = vunpack.c.l.s4 1983009808
          %v510 = vunpack.c.0.s8 %v509
          %v511 = vlaneseq
          %v512 = vshrl.u32 %v511, 7
          %v513 = vsub.s32 %v510, %v512
          %v514 = vrot.slane %v466, %v513
          %v517 = vunpack.c.l.s4 1983009808
          %v518 = vunpack.c.0.s8 %v517
          %v519 = vlaneseq
          %v520 = vshrl.u32 %v519, 7
          %v521 = vsub.s32 %v518, %v520
          %v522 = vrot.slane %v472, %v521
          %v523 = vcombine.low %v514, %v522
          %v524 = vcombine.high %v514, %v522
          %v526 = vunpack.c.l.s4 1934713408
          %v527 = vunpack.c.0.s8 %v526
          %v528 = vlaneseq
          %v529 = vshrl.u32 %v528, 7
          %v530 = vsub.s32 %v527, %v529
          %v531 = vrot.slane %v523, %v530
          %v533 = vunpack.c.l.s4 1934713408
          %v534 = vunpack.c.0.s8 %v533
          %v535 = vlaneseq
          %v536 = vshrl.u32 %v535, 7
          %v537 = vsub.s32 %v534, %v536
          %v538 = vrot.slane %v524, %v537
          %v539 = vcombine.high %v531, 0
          %v540 = vcombine.high %v538, 0
          %v541 = vcombine.low %v497, %v504
          %v543 = vunpack.c.l.s4 1983009808
          %v544 = vunpack.c.0.s8 %v543
          %v545 = vlaneseq
          %v546 = vshrl.u32 %v545, 7
          %v547 = vsub.s32 %v544, %v546
          %v548 = vrot.slane %v541, %v547
          %v549 = vcombine.low %v505, %v506
          %v551 = vunpack.c.l.s4 1983009808
          %v552 = vunpack.c.0.s8 %v551
          %v553 = vlaneseq
          %v554 = vshrl.u32 %v553, 7
          %v555 = vsub.s32 %v552, %v554
          %v556 = vrot.slane %v549, %v555
          %v557 = vcombine.low %v548, %v556
          %v559 = vunpack.c.l.s4 1934713408
          %v560 = vunpack.c.0.s8 %v559
          %v561 = vlaneseq
          %v562 = vshrl.u32 %v561, 7
          %v563 = vsub.s32 %v560, %v562
          %v564 = vrot.slane %v557, %v563
          %v565 = vcombine.high %v564, 0
          %v566 = vcombine.low %v531, %v538
          %v568 = vunpack.c.l.s4 1983009808
          %v569 = vunpack.c.0.s8 %v568
          %v570 = vlaneseq
          %v571 = vshrl.u32 %v570, 7
          %v572 = vsub.s32 %v569, %v571
          %v573 = vrot.slane %v566, %v572
          %v574 = vcombine.low %v539, %v540
          %v576 = vunpack.c.l.s4 1983009808
          %v577 = vunpack.c.0.s8 %v576
          %v578 = vlaneseq
          %v579 = vshrl.u32 %v578, 7
          %v580 = vsub.s32 %v577, %v579
          %v581 = vrot.slane %v574, %v580
          %v582 = vcombine.low %v573, %v581
          %v584 = vunpack.c.l.s4 1934713408
          %v585 = vunpack.c.0.s8 %v584
          %v586 = vlaneseq
          %v587 = vshrl.u32 %v586, 7
          %v588 = vsub.s32 %v585, %v587
          %v589 = vrot.slane %v582, %v588
          %v590 = vcombine.high %v589, 0
          %v593 = vpack.i.b16 %v589, %v564
          %v594 = vshrl.u32 %v564, 16
          %v595 = vshrl.u32 %v589, 16
          %v596 = vpack.i.b16 %v595, %v594
          %v599 = vpack.i.b16 %v590, %v565
          %v600 = vshrl.u32 %v565, 16
          %v601 = vshrl.u32 %v590, 16
          %v602 = vpack.i.b16 %v601, %v600
          %v603 = vld [vmem:[%s405] sm:$0xf]
          %v604 = vunpack.c.l.b16 %v593
          %v605 = vunpack.c.l.b16 %v596
          %v606 = vunpack.c.l.b16 %v599
          %v607 = vunpack.c.l.b16 %v602
          %v608 = vpack.c.b16 %v605, %v604
          %v609 = vpack.c.b16 %v607, %v606
          %vm610 = vcmask 64512
          %v612 = vsel %vm610, %v608, 0
          %v615 = vsel %vm610, %v609, 0
          %vm617 = vcmask 1043456
          %v619 = vsel %vm617, %v603, 0
          %621 = vmatprep.subr.bf16.mxu0 0
          %622 = vmatpush1.bf16.msra.mxu0 0
          %623 = vmatprep.subr.bf16.mxu0 0
          %624 = vmatpush1.bf16.msra.mxu0 0
          %625 = vmatprep.subr.bf16.mxu0 0
          %626 = vmatpush1.bf16.msra.mxu0 0
          %627 = vmatprep.subr.bf16.mxu0 0
          %628 = vmatpush1.bf16.msra.mxu0 0
          %629 = vmatprep.subr.bf16.mxu0 0
          %630 = vmatpush1.bf16.msra.mxu0 0
          %631 = vmatprep.subr.bf16.mxu0 0
          %632 = vmatpush1.bf16.msra.mxu0 0
          %633 = vmatprep.subr.bf16.mxu0 0
          %634 = vmatpush1.bf16.msra.mxu0 0
          %635 = vmatprep.subr.bf16.mxu0 0
          %636 = vmatpush1.bf16.msra.mxu0 %v619
          %637 = vmatprep.subr.bf16.mxu0 0
          %638 = vmatpush2.bf16.msra.mxu0 0
          %639 = vmatprep.subr.bf16.mxu0 0
          %640 = vmatpush2.bf16.msra.mxu0 0
          %641 = vmatprep.subr.bf16.mxu0 0
          %642 = vmatpush2.bf16.msra.mxu0 0
          %643 = vmatprep.subr.bf16.mxu0 0
          %644 = vmatpush2.bf16.msra.mxu0 0
          %645 = vmatprep.subr.bf16.mxu0 0
          %646 = vmatpush2.bf16.msra.mxu0 0
          %647 = vmatprep.subr.bf16.mxu0 0
          %648 = vmatpush2.bf16.msra.mxu0 0
          %649 = vmatprep.subr.bf16.mxu0 0
          %650 = vmatpush2.bf16.msra.mxu0 0
          %651 = vmatprep.subr.bf16.mxu0 0
          %652 = vmatpush2.bf16.msra.mxu0 0
          %653 = vmatprep.mubr.bf16.mxu0 0
          %654 = vmatmul.mubr.bf16.gmra.mxu0 %v612
          %v655 = vpop.f32.mrf.mxu0
          %v656 = vadd.f32 0.0, %v655
          %v657 = vpop.f32.mrf.mxu0
          %v658 = vpop.f32.mrf.mxu0
          %v659 = vadd.f32 0.0, %v658
          %v660 = vpop.f32.mrf.mxu0
          %661 = vmatprep.mubr.bf16.mxu0 0
          %662 = vmatmul.mubr.bf16.gmra.mxu0 %v615
          %v663 = vpop.f32.mrf.mxu0
          %v664 = vadd.f32 0.0, %v663
          %v665 = vpop.f32.mrf.mxu0
          %v666 = vpop.f32.mrf.mxu0
          %v667 = vadd.f32 0.0, %v666
          %v668 = vpop.f32.mrf.mxu0
          %669 = vdwg.mxu0
          %v670 = vpack.c.bf16 %v656, %v656
          %v671 = vpack.c.bf16 %v659, %v659
          %v672 = vpack.c.bf16 %v664, %v664
          %v673 = vpack.c.bf16 %v667, %v667
          %v674 = vld [vmem:[%s410] sm:$0xf]
          %v675 = vld [vmem:[%s410 + $0x4] sm:$0xf]
          %v676 = vld [vmem:[%s410 + $0x8] sm:$0xf]
          %v677 = vld [vmem:[%s410 + $0xc] sm:$0xf]
          %679 = vrot.lane.b32.xlu0 %v670, 120
          %v680 = vpop.permute.xlu0 %679
          %v682 = vsel %vm610, %v670, 0
          %v685 = vsel %vm610, %v680, 0
          %687 = vmatprep.subr.bf16.mxu0 0
          %688 = vmatpush1.bf16.xpose.msra.mxu0 0
          %689 = vmatprep.subr.bf16.mxu0 0
          %690 = vmatpush1.bf16.xpose.msra.mxu0 0
          %691 = vmatprep.subr.bf16.mxu0 0
          %692 = vmatpush1.bf16.xpose.msra.mxu0 0
          %693 = vmatprep.subr.bf16.mxu0 0
          %694 = vmatpush1.bf16.xpose.msra.mxu0 0
          %695 = vmatprep.subr.bf16.mxu0 0
          %696 = vmatpush1.bf16.xpose.msra.mxu0 0
          %697 = vmatprep.subr.bf16.mxu0 0
          %698 = vmatpush1.bf16.xpose.msra.mxu0 0
          %699 = vmatprep.subr.bf16.mxu0 0
          %700 = vmatpush1.bf16.xpose.msra.mxu0 0
          %701 = vmatprep.subr.bf16.mxu0 0
          %702 = vmatpush1.bf16.xpose.msra.mxu0 %v685
          %703 = vmatprep.subr.bf16.mxu0 0
          %704 = vmatpush2.bf16.xpose.msra.mxu0 0
          %705 = vmatprep.subr.bf16.mxu0 0
          %706 = vmatpush2.bf16.xpose.msra.mxu0 0
          %707 = vmatprep.subr.bf16.mxu0 0
          %708 = vmatpush2.bf16.xpose.msra.mxu0 0
          %709 = vmatprep.subr.bf16.mxu0 0
          %710 = vmatpush2.bf16.xpose.msra.mxu0 0
          %711 = vmatprep.subr.bf16.mxu0 0
          %712 = vmatpush2.bf16.xpose.msra.mxu0 0
          %713 = vmatprep.subr.bf16.mxu0 0
          %714 = vmatpush2.bf16.xpose.msra.mxu0 0
          %715 = vmatprep.subr.bf16.mxu0 0
          %716 = vmatpush2.bf16.xpose.msra.mxu0 0
          %717 = vmatprep.subr.bf16.mxu0 0
          %718 = vmatpush2.bf16.xpose.msra.mxu0 0
          %719 = vmatprep.mubr.bf16.mxu0 0
          %720 = vmatmul.mubr.bf16.gmra.mxu0 %v682
          %v721 = vpop.f32.mrf.mxu0
          %v722 = vadd.f32 0.0, %v721
          %v723 = vpop.f32.mrf.mxu0
          %v724 = vpop.f32.mrf.mxu0
          %v725 = vpop.f32.mrf.mxu0
          %726 = vdwg.mxu0
          %728 = vrot.lane.b32.xlu0 %v671, 120
          %v729 = vpop.permute.xlu0 %728
          %v731 = vsel %vm610, %v671, 0
          %v734 = vsel %vm610, %v729, 0
          %736 = vmatprep.subr.bf16.mxu0 0
          %737 = vmatpush1.bf16.xpose.msra.mxu0 0
          %738 = vmatprep.subr.bf16.mxu0 0
          %739 = vmatpush1.bf16.xpose.msra.mxu0 0
          %740 = vmatprep.subr.bf16.mxu0 0
          %741 = vmatpush1.bf16.xpose.msra.mxu0 0
          %742 = vmatprep.subr.bf16.mxu0 0
          %743 = vmatpush1.bf16.xpose.msra.mxu0 0
          %744 = vmatprep.subr.bf16.mxu0 0
          %745 = vmatpush1.bf16.xpose.msra.mxu0 0
          %746 = vmatprep.subr.bf16.mxu0 0
          %747 = vmatpush1.bf16.xpose.msra.mxu0 0
          %748 = vmatprep.subr.bf16.mxu0 0
          %749 = vmatpush1.bf16.xpose.msra.mxu0 0
          %750 = vmatprep.subr.bf16.mxu0 0
          %751 = vmatpush1.bf16.xpose.msra.mxu0 %v734
          %752 = vmatprep.subr.bf16.mxu0 0
          %753 = vmatpush2.bf16.xpose.msra.mxu0 0
          %754 = vmatprep.subr.bf16.mxu0 0
          %755 = vmatpush2.bf16.xpose.msra.mxu0 0
          %756 = vmatprep.subr.bf16.mxu0 0
          %757 = vmatpush2.bf16.xpose.msra.mxu0 0
          %758 = vmatprep.subr.bf16.mxu0 0
          %759 = vmatpush2.bf16.xpose.msra.mxu0 0
          %760 = vmatprep.subr.bf16.mxu0 0
          %761 = vmatpush2.bf16.xpose.msra.mxu0 0
          %762 = vmatprep.subr.bf16.mxu0 0
          %763 = vmatpush2.bf16.xpose.msra.mxu0 0
          %764 = vmatprep.subr.bf16.mxu0 0
          %765 = vmatpush2.bf16.xpose.msra.mxu0 0
          %766 = vmatprep.subr.bf16.mxu0 0
          %767 = vmatpush2.bf16.xpose.msra.mxu0 0
          %768 = vmatprep.mubr.bf16.mxu0 0
          %769 = vmatmul.mubr.bf16.gmra.mxu0 %v731
          %v770 = vpop.f32.mrf.mxu0
          %v771 = vadd.f32 0.0, %v770
          %v772 = vpop.f32.mrf.mxu0
          %v773 = vpop.f32.mrf.mxu0
          %v774 = vpop.f32.mrf.mxu0
          %775 = vdwg.mxu0
          %777 = vrot.lane.b32.xlu0 %v672, 120
          %v778 = vpop.permute.xlu0 %777
          %v780 = vsel %vm610, %v672, 0
          %v783 = vsel %vm610, %v778, 0
          %785 = vmatprep.subr.bf16.mxu0 0
          %786 = vmatpush1.bf16.xpose.msra.mxu0 0
          %787 = vmatprep.subr.bf16.mxu0 0
          %788 = vmatpush1.bf16.xpose.msra.mxu0 0
          %789 = vmatprep.subr.bf16.mxu0 0
          %790 = vmatpush1.bf16.xpose.msra.mxu0 0
          %791 = vmatprep.subr.bf16.mxu0 0
          %792 = vmatpush1.bf16.xpose.msra.mxu0 0
          %793 = vmatprep.subr.bf16.mxu0 0
          %794 = vmatpush1.bf16.xpose.msra.mxu0 0
          %795 = vmatprep.subr.bf16.mxu0 0
          %796 = vmatpush1.bf16.xpose.msra.mxu0 0
          %797 = vmatprep.subr.bf16.mxu0 0
          %798 = vmatpush1.bf16.xpose.msra.mxu0 0
          %799 = vmatprep.subr.bf16.mxu0 0
          %800 = vmatpush1.bf16.xpose.msra.mxu0 %v783
          %801 = vmatprep.subr.bf16.mxu0 0
          %802 = vmatpush2.bf16.xpose.msra.mxu0 0
          %803 = vmatprep.subr.bf16.mxu0 0
          %804 = vmatpush2.bf16.xpose.msra.mxu0 0
          %805 = vmatprep.subr.bf16.mxu0 0
          %806 = vmatpush2.bf16.xpose.msra.mxu0 0
          %807 = vmatprep.subr.bf16.mxu0 0
          %808 = vmatpush2.bf16.xpose.msra.mxu0 0
          %809 = vmatprep.subr.bf16.mxu0 0
          %810 = vmatpush2.bf16.xpose.msra.mxu0 0
          %811 = vmatprep.subr.bf16.mxu0 0
          %812 = vmatpush2.bf16.xpose.msra.mxu0 0
          %813 = vmatprep.subr.bf16.mxu0 0
          %814 = vmatpush2.bf16.xpose.msra.mxu0 0
          %815 = vmatprep.subr.bf16.mxu0 0
          %816 = vmatpush2.bf16.xpose.msra.mxu0 0
          %817 = vmatprep.mubr.bf16.mxu0 0
          %818 = vmatmul.mubr.bf16.gmra.mxu0 %v780
          %v819 = vpop.f32.mrf.mxu0
          %v820 = vadd.f32 0.0, %v819
          %v821 = vpop.f32.mrf.mxu0
          %v822 = vpop.f32.mrf.mxu0
          %v823 = vpop.f32.mrf.mxu0
          %824 = vdwg.mxu0
          %826 = vrot.lane.b32.xlu0 %v673, 120
          %v827 = vpop.permute.xlu0 %826
          %v829 = vsel %vm610, %v673, 0
          %v832 = vsel %vm610, %v827, 0
          %834 = vmatprep.subr.bf16.mxu0 0
          %835 = vmatpush1.bf16.xpose.msra.mxu0 0
          %836 = vmatprep.subr.bf16.mxu0 0
          %837 = vmatpush1.bf16.xpose.msra.mxu0 0
          %838 = vmatprep.subr.bf16.mxu0 0
          %839 = vmatpush1.bf16.xpose.msra.mxu0 0
          %840 = vmatprep.subr.bf16.mxu0 0
          %841 = vmatpush1.bf16.xpose.msra.mxu0 0
          %842 = vmatprep.subr.bf16.mxu0 0
          %843 = vmatpush1.bf16.xpose.msra.mxu0 0
          %844 = vmatprep.subr.bf16.mxu0 0
          %845 = vmatpush1.bf16.xpose.msra.mxu0 0
          %846 = vmatprep.subr.bf16.mxu0 0
          %847 = vmatpush1.bf16.xpose.msra.mxu0 0
          %848 = vmatprep.subr.bf16.mxu0 0
          %849 = vmatpush1.bf16.xpose.msra.mxu0 %v832
          %850 = vmatprep.subr.bf16.mxu0 0
          %851 = vmatpush2.bf16.xpose.msra.mxu0 0
          %852 = vmatprep.subr.bf16.mxu0 0
          %853 = vmatpush2.bf16.xpose.msra.mxu0 0
          %854 = vmatprep.subr.bf16.mxu0 0
          %855 = vmatpush2.bf16.xpose.msra.mxu0 0
          %856 = vmatprep.subr.bf16.mxu0 0
          %857 = vmatpush2.bf16.xpose.msra.mxu0 0
          %858 = vmatprep.subr.bf16.mxu0 0
          %859 = vmatpush2.bf16.xpose.msra.mxu0 0
          %860 = vmatprep.subr.bf16.mxu0 0
          %861 = vmatpush2.bf16.xpose.msra.mxu0 0
          %862 = vmatprep.subr.bf16.mxu0 0
          %863 = vmatpush2.bf16.xpose.msra.mxu0 0
          %864 = vmatprep.subr.bf16.mxu0 0
          %865 = vmatpush2.bf16.xpose.msra.mxu0 0
          %866 = vmatprep.mubr.bf16.mxu0 0
          %867 = vmatmul.mubr.bf16.gmra.mxu0 %v829
          %v868 = vpop.f32.mrf.mxu0
          %v869 = vadd.f32 0.0, %v868
          %v870 = vpop.f32.mrf.mxu0
          %v871 = vpop.f32.mrf.mxu0
          %v872 = vpop.f32.mrf.mxu0
          %873 = vdwg.mxu0
          %v874 = vsel %vm610, %v722, -inf
          %875 = vmax.xlane.f32.xlu0 %v874
          %v876 = vpop.xlane.xlu0 %875
          %v877 = vsel %vm610, %v771, -inf
          %878 = vmax.xlane.f32.xlu0 %v877
          %v879 = vpop.xlane.xlu0 %878
          %v880 = vsel %vm610, %v820, -inf
          %881 = vmax.xlane.f32.xlu0 %v880
          %v882 = vpop.xlane.xlu0 %881
          %v883 = vsel %vm610, %v869, -inf
          %884 = vmax.xlane.f32.xlu0 %v883
          %v885 = vpop.xlane.xlu0 %884
          %v886 = vsub.f32 %v722, %v876
          %v887 = vsub.f32 %v771, %v879
          %v888 = vsub.f32 %v820, %v882
          %v889 = vsub.f32 %v869, %v885
          %v890 = vmul.f32 %v886, 1.442695
          %v891 = vpow.pop %v890
          %v892 = vmul.f32 %v887, 1.442695
          %v893 = vpow.pop %v892
          %v894 = vmul.f32 %v888, 1.442695
          %v895 = vpow.pop %v894
          %v896 = vmul.f32 %v889, 1.442695
          %v897 = vpow.pop %v896
          %v898 = vsel %vm610, %v891, 0.0
          %899 = vadd.xlane.f32.xlu0 %v898
          %v900 = vpop.xlane.xlu0 %899
          %v901 = vsel %vm610, %v893, 0.0
          %902 = vadd.xlane.f32.xlu0 %v901
          %v903 = vpop.xlane.xlu0 %902
          %v904 = vsel %vm610, %v895, 0.0
          %905 = vadd.xlane.f32.xlu0 %v904
          %v906 = vpop.xlane.xlu0 %905
          %v907 = vsel %vm610, %v897, 0.0
          %908 = vadd.xlane.f32.xlu0 %v907
          %v909 = vpop.xlane.xlu0 %908
          %v910 = vrcp.pop %v900
          %v911 = vrcp.pop %v903
          %v912 = vrcp.pop %v906
          %v913 = vrcp.pop %v909
          %v914 = vmul.f32 %v891, %v910
          %v915 = vmul.f32 %v893, %v911
          %v916 = vmul.f32 %v895, %v912
          %v917 = vmul.f32 %v897, %v913
          %v918 = vpack.c.bf16 %v914, %v914
          %v919 = vpack.c.bf16 %v915, %v915
          %v920 = vpack.c.bf16 %v916, %v916
          %v921 = vpack.c.bf16 %v917, %v917
          %922 = vrot.lane.b32.xlu0 %v670, 112
          %v923 = vpop.permute.xlu0 %922
          %v925 = vsel %vm610, %v918, 0
          %v928 = vsel %vm617, %v923, 0
          %930 = vmatprep.subr.bf16.mxu0 0
          %931 = vmatpush1.bf16.msra.mxu0 0
          %932 = vmatprep.subr.bf16.mxu0 0
          %933 = vmatpush1.bf16.msra.mxu0 0
          %934 = vmatprep.subr.bf16.mxu0 0
          %935 = vmatpush1.bf16.msra.mxu0 0
          %936 = vmatprep.subr.bf16.mxu0 0
          %937 = vmatpush1.bf16.msra.mxu0 0
          %938 = vmatprep.subr.bf16.mxu0 0
          %939 = vmatpush1.bf16.msra.mxu0 0
          %940 = vmatprep.subr.bf16.mxu0 0
          %941 = vmatpush1.bf16.msra.mxu0 0
          %942 = vmatprep.subr.bf16.mxu0 0
          %943 = vmatpush1.bf16.msra.mxu0 0
          %944 = vmatprep.subr.bf16.mxu0 0
          %945 = vmatpush1.bf16.msra.mxu0 %v928
          %946 = vmatprep.subr.bf16.mxu0 0
          %947 = vmatpush2.bf16.msra.mxu0 0
          %948 = vmatprep.subr.bf16.mxu0 0
          %949 = vmatpush2.bf16.msra.mxu0 0
          %950 = vmatprep.subr.bf16.mxu0 0
          %951 = vmatpush2.bf16.msra.mxu0 0
          %952 = vmatprep.subr.bf16.mxu0 0
          %953 = vmatpush2.bf16.msra.mxu0 0
          %954 = vmatprep.subr.bf16.mxu0 0
          %955 = vmatpush2.bf16.msra.mxu0 0
          %956 = vmatprep.subr.bf16.mxu0 0
          %957 = vmatpush2.bf16.msra.mxu0 0
          %958 = vmatprep.subr.bf16.mxu0 0
          %959 = vmatpush2.bf16.msra.mxu0 0
          %960 = vmatprep.subr.bf16.mxu0 0
          %961 = vmatpush2.bf16.msra.mxu0 0
          %962 = vmatprep.mubr.bf16.mxu0 0
          %963 = vmatmul.mubr.bf16.gmra.mxu0 %v925
          %v964 = vpop.f32.mrf.mxu0
          %v965 = vadd.f32 0.0, %v964
          %v966 = vpop.f32.mrf.mxu0
          %v967 = vpop.f32.mrf.mxu0
          %v968 = vpop.f32.mrf.mxu0
          %969 = vdwg.mxu0
          %970 = vrot.lane.b32.xlu0 %v671, 112
          %v971 = vpop.permute.xlu0 %970
          %v973 = vsel %vm610, %v919, 0
          %v976 = vsel %vm617, %v971, 0
          %978 = vmatprep.subr.bf16.mxu0 0
          %979 = vmatpush1.bf16.msra.mxu0 0
          %980 = vmatprep.subr.bf16.mxu0 0
          %981 = vmatpush1.bf16.msra.mxu0 0
          %982 = vmatprep.subr.bf16.mxu0 0
          %983 = vmatpush1.bf16.msra.mxu0 0
          %984 = vmatprep.subr.bf16.mxu0 0
          %985 = vmatpush1.bf16.msra.mxu0 0
          %986 = vmatprep.subr.bf16.mxu0 0
          %987 = vmatpush1.bf16.msra.mxu0 0
          %988 = vmatprep.subr.bf16.mxu0 0
          %989 = vmatpush1.bf16.msra.mxu0 0
          %990 = vmatprep.subr.bf16.mxu0 0
          %991 = vmatpush1.bf16.msra.mxu0 0
          %992 = vmatprep.subr.bf16.mxu0 0
          %993 = vmatpush1.bf16.msra.mxu0 %v976
          %994 = vmatprep.subr.bf16.mxu0 0
          %995 = vmatpush2.bf16.msra.mxu0 0
          %996 = vmatprep.subr.bf16.mxu0 0
          %997 = vmatpush2.bf16.msra.mxu0 0
          %998 = vmatprep.subr.bf16.mxu0 0
          %999 = vmatpush2.bf16.msra.mxu0 0
          %1000 = vmatprep.subr.bf16.mxu0 0
          %1001 = vmatpush2.bf16.msra.mxu0 0
          %1002 = vmatprep.subr.bf16.mxu0 0
          %1003 = vmatpush2.bf16.msra.mxu0 0
          %1004 = vmatprep.subr.bf16.mxu0 0
          %1005 = vmatpush2.bf16.msra.mxu0 0
          %1006 = vmatprep.subr.bf16.mxu0 0
          %1007 = vmatpush2.bf16.msra.mxu0 0
          %1008 = vmatprep.subr.bf16.mxu0 0
          %1009 = vmatpush2.bf16.msra.mxu0 0
          %1010 = vmatprep.mubr.bf16.mxu0 0
          %1011 = vmatmul.mubr.bf16.gmra.mxu0 %v973
          %v1012 = vpop.f32.mrf.mxu0
          %v1013 = vadd.f32 0.0, %v1012
          %v1014 = vpop.f32.mrf.mxu0
          %v1015 = vpop.f32.mrf.mxu0
          %v1016 = vpop.f32.mrf.mxu0
          %1017 = vdwg.mxu0
          %1018 = vrot.lane.b32.xlu0 %v672, 112
          %v1019 = vpop.permute.xlu0 %1018
          %v1021 = vsel %vm610, %v920, 0
          %v1024 = vsel %vm617, %v1019, 0
          %1026 = vmatprep.subr.bf16.mxu0 0
          %1027 = vmatpush1.bf16.msra.mxu0 0
          %1028 = vmatprep.subr.bf16.mxu0 0
          %1029 = vmatpush1.bf16.msra.mxu0 0
          %1030 = vmatprep.subr.bf16.mxu0 0
          %1031 = vmatpush1.bf16.msra.mxu0 0
          %1032 = vmatprep.subr.bf16.mxu0 0
          %1033 = vmatpush1.bf16.msra.mxu0 0
          %1034 = vmatprep.subr.bf16.mxu0 0
          %1035 = vmatpush1.bf16.msra.mxu0 0
          %1036 = vmatprep.subr.bf16.mxu0 0
          %1037 = vmatpush1.bf16.msra.mxu0 0
          %1038 = vmatprep.subr.bf16.mxu0 0
          %1039 = vmatpush1.bf16.msra.mxu0 0
          %1040 = vmatprep.subr.bf16.mxu0 0
          %1041 = vmatpush1.bf16.msra.mxu0 %v1024
          %1042 = vmatprep.subr.bf16.mxu0 0
          %1043 = vmatpush2.bf16.msra.mxu0 0
          %1044 = vmatprep.subr.bf16.mxu0 0
          %1045 = vmatpush2.bf16.msra.mxu0 0
          %1046 = vmatprep.subr.bf16.mxu0 0
          %1047 = vmatpush2.bf16.msra.mxu0 0
          %1048 = vmatprep.subr.bf16.mxu0 0
          %1049 = vmatpush2.bf16.msra.mxu0 0
          %1050 = vmatprep.subr.bf16.mxu0 0
          %1051 = vmatpush2.bf16.msra.mxu0 0
          %1052 = vmatprep.subr.bf16.mxu0 0
          %1053 = vmatpush2.bf16.msra.mxu0 0
          %1054 = vmatprep.subr.bf16.mxu0 0
          %1055 = vmatpush2.bf16.msra.mxu0 0
          %1056 = vmatprep.subr.bf16.mxu0 0
          %1057 = vmatpush2.bf16.msra.mxu0 0
          %1058 = vmatprep.mubr.bf16.mxu0 0
          %1059 = vmatmul.mubr.bf16.gmra.mxu0 %v1021
          %v1060 = vpop.f32.mrf.mxu0
          %v1061 = vadd.f32 0.0, %v1060
          %v1062 = vpop.f32.mrf.mxu0
          %v1063 = vpop.f32.mrf.mxu0
          %v1064 = vpop.f32.mrf.mxu0
          %1065 = vdwg.mxu0
          %1066 = vrot.lane.b32.xlu0 %v673, 112
          %v1067 = vpop.permute.xlu0 %1066
          %v1069 = vsel %vm610, %v921, 0
          %v1072 = vsel %vm617, %v1067, 0
          %1074 = vmatprep.subr.bf16.mxu0 0
          %1075 = vmatpush1.bf16.msra.mxu0 0
          %1076 = vmatprep.subr.bf16.mxu0 0
          %1077 = vmatpush1.bf16.msra.mxu0 0
          %1078 = vmatprep.subr.bf16.mxu0 0
          %1079 = vmatpush1.bf16.msra.mxu0 0
          %1080 = vmatprep.subr.bf16.mxu0 0
          %1081 = vmatpush1.bf16.msra.mxu0 0
          %1082 = vmatprep.subr.bf16.mxu0 0
          %1083 = vmatpush1.bf16.msra.mxu0 0
          %1084 = vmatprep.subr.bf16.mxu0 0
          %1085 = vmatpush1.bf16.msra.mxu0 0
          %1086 = vmatprep.subr.bf16.mxu0 0
          %1087 = vmatpush1.bf16.msra.mxu0 0
          %1088 = vmatprep.subr.bf16.mxu0 0
          %1089 = vmatpush1.bf16.msra.mxu0 %v1072
          %1090 = vmatprep.subr.bf16.mxu0 0
          %1091 = vmatpush2.bf16.msra.mxu0 0
          %1092 = vmatprep.subr.bf16.mxu0 0
          %1093 = vmatpush2.bf16.msra.mxu0 0
          %1094 = vmatprep.subr.bf16.mxu0 0
          %1095 = vmatpush2.bf16.msra.mxu0 0
          %1096 = vmatprep.subr.bf16.mxu0 0
          %1097 = vmatpush2.bf16.msra.mxu0 0
          %1098 = vmatprep.subr.bf16.mxu0 0
          %1099 = vmatpush2.bf16.msra.mxu0 0
          %1100 = vmatprep.subr.bf16.mxu0 0
          %1101 = vmatpush2.bf16.msra.mxu0 0
          %1102 = vmatprep.subr.bf16.mxu0 0
          %1103 = vmatpush2.bf16.msra.mxu0 0
          %1104 = vmatprep.subr.bf16.mxu0 0
          %1105 = vmatpush2.bf16.msra.mxu0 0
          %1106 = vmatprep.mubr.bf16.mxu0 0
          %1107 = vmatmul.mubr.bf16.gmra.mxu0 %v1069
          %v1108 = vpop.f32.mrf.mxu0
          %v1109 = vadd.f32 0.0, %v1108
          %v1110 = vpop.f32.mrf.mxu0
          %v1111 = vpop.f32.mrf.mxu0
          %v1112 = vpop.f32.mrf.mxu0
          %1113 = vdwg.mxu0
          %v1114 = vcombine.low %v965, %v1061
          %v1115 = vcombine.high %v965, %v1061
          %v1117 = vunpack.c.l.s4 1983009808
          %v1118 = vunpack.c.0.s8 %v1117
          %v1119 = vlaneseq
          %v1120 = vshrl.u32 %v1119, 7
          %v1121 = vsub.s32 %v1118, %v1120
          %v1122 = vrot.slane %v1114, %v1121
          %v1124 = vunpack.c.l.s4 1983009808
          %v1125 = vunpack.c.0.s8 %v1124
          %v1126 = vlaneseq
          %v1127 = vshrl.u32 %v1126, 7
          %v1128 = vsub.s32 %v1125, %v1127
          %v1129 = vrot.slane %v1115, %v1128
          %v1130 = vcombine.low %v1013, %v1109
          %v1131 = vcombine.high %v1013, %v1109
          %v1133 = vunpack.c.l.s4 1983009808
          %v1134 = vunpack.c.0.s8 %v1133
          %v1135 = vlaneseq
          %v1136 = vshrl.u32 %v1135, 7
          %v1137 = vsub.s32 %v1134, %v1136
          %v1138 = vrot.slane %v1130, %v1137
          %v1140 = vunpack.c.l.s4 1983009808
          %v1141 = vunpack.c.0.s8 %v1140
          %v1142 = vlaneseq
          %v1143 = vshrl.u32 %v1142, 7
          %v1144 = vsub.s32 %v1141, %v1143
          %v1145 = vrot.slane %v1131, %v1144
          %v1146 = vcombine.low %v1122, %v1138
          %v1147 = vcombine.high %v1122, %v1138
          %v1149 = vunpack.c.l.s4 1934713408
          %v1150 = vunpack.c.0.s8 %v1149
          %v1151 = vlaneseq
          %v1152 = vshrl.u32 %v1151, 7
          %v1153 = vsub.s32 %v1150, %v1152
          %v1154 = vrot.slane %v1146, %v1153
          %v1156 = vunpack.c.l.s4 1934713408
          %v1157 = vunpack.c.0.s8 %v1156
          %v1158 = vlaneseq
          %v1159 = vshrl.u32 %v1158, 7
          %v1160 = vsub.s32 %v1157, %v1159
          %v1161 = vrot.slane %v1147, %v1160
          %v1162 = vcombine.low %v1129, %v1145
          %v1163 = vcombine.high %v1129, %v1145
          %v1165 = vunpack.c.l.s4 1934713408
          %v1166 = vunpack.c.0.s8 %v1165
          %v1167 = vlaneseq
          %v1168 = vshrl.u32 %v1167, 7
          %v1169 = vsub.s32 %v1166, %v1168
          %v1170 = vrot.slane %v1162, %v1169
          %v1172 = vunpack.c.l.s4 1934713408
          %v1173 = vunpack.c.0.s8 %v1172
          %v1174 = vlaneseq
          %v1175 = vshrl.u32 %v1174, 7
          %v1176 = vsub.s32 %v1173, %v1175
          %v1177 = vrot.slane %v1163, %v1176
          %v1178 = vcombine.high %v1154, 0.0
          %v1179 = vcombine.high %v1161, 0.0
          %v1180 = vcombine.high %v1170, 0.0
          %v1181 = vcombine.high %v1177, 0.0
          %v1182 = vcombine.low %v1154, %v1161
          %v1184 = vunpack.c.l.s4 1983009808
          %v1185 = vunpack.c.0.s8 %v1184
          %v1186 = vlaneseq
          %v1187 = vshrl.u32 %v1186, 7
          %v1188 = vsub.s32 %v1185, %v1187
          %v1189 = vrot.slane %v1182, %v1188
          %v1190 = vcombine.low %v1178, %v1179
          %v1192 = vunpack.c.l.s4 1983009808
          %v1193 = vunpack.c.0.s8 %v1192
          %v1194 = vlaneseq
          %v1195 = vshrl.u32 %v1194, 7
          %v1196 = vsub.s32 %v1193, %v1195
          %v1197 = vrot.slane %v1190, %v1196
          %v1198 = vcombine.low %v1170, %v1177
          %v1200 = vunpack.c.l.s4 1983009808
          %v1201 = vunpack.c.0.s8 %v1200
          %v1202 = vlaneseq
          %v1203 = vshrl.u32 %v1202, 7
          %v1204 = vsub.s32 %v1201, %v1203
          %v1205 = vrot.slane %v1198, %v1204
          %v1206 = vcombine.low %v1180, %v1181
          %v1208 = vunpack.c.l.s4 1983009808
          %v1209 = vunpack.c.0.s8 %v1208
          %v1210 = vlaneseq
          %v1211 = vshrl.u32 %v1210, 7
          %v1212 = vsub.s32 %v1209, %v1211
          %v1213 = vrot.slane %v1206, %v1212
          %v1214 = vcombine.low %v1189, %v1197
          %v1215 = vcombine.high %v1189, %v1197
          %v1217 = vunpack.c.l.s4 1934713408
          %v1218 = vunpack.c.0.s8 %v1217
          %v1219 = vlaneseq
          %v1220 = vshrl.u32 %v1219, 7
          %v1221 = vsub.s32 %v1218, %v1220
          %v1222 = vrot.slane %v1214, %v1221
          %v1224 = vunpack.c.l.s4 1934713408
          %v1225 = vunpack.c.0.s8 %v1224
          %v1226 = vlaneseq
          %v1227 = vshrl.u32 %v1226, 7
          %v1228 = vsub.s32 %v1225, %v1227
          %v1229 = vrot.slane %v1215, %v1228
          %v1230 = vcombine.low %v1205, %v1213
          %v1231 = vcombine.high %v1205, %v1213
          %v1233 = vunpack.c.l.s4 1934713408
          %v1234 = vunpack.c.0.s8 %v1233
          %v1235 = vlaneseq
          %v1236 = vshrl.u32 %v1235, 7
          %v1237 = vsub.s32 %v1234, %v1236
          %v1238 = vrot.slane %v1230, %v1237
          %v1240 = vunpack.c.l.s4 1934713408
          %v1241 = vunpack.c.0.s8 %v1240
          %v1242 = vlaneseq
          %v1243 = vshrl.u32 %v1242, 7
          %v1244 = vsub.s32 %v1241, %v1243
          %v1245 = vrot.slane %v1231, %v1244
          %v1246 = vcombine.low %v1222, %v1238
          %v1247 = vcombine.high %v1222, %v1238
          %v1248 = vcombine.low %v1229, %v1245
          %v1249 = vcombine.high %v1229, %v1245
          %1251 = vrot.lane.b32.xlu0 %v1247, 8
          %v1252 = vpop.permute.xlu0 %1251
          %1255 = vrot.lane.b32.xlu0 %v1248, 16
          %v1256 = vpop.permute.xlu0 %1255
          %1259 = vrot.lane.b32.xlu0 %v1249, 24
          %v1260 = vpop.permute.xlu0 %1259
          %v1262 = vsel %vm610, %v1246, %v1252
          %vm1263 = vcmask 130048
          %v1264 = vsel %vm1263, %v1262, %v1256
          %vm1265 = vcmask 195584
          %v1266 = vsel %vm1265, %v1264, %v1260
          %v1267 = vpack.c.bf16 %v1266, %v1266
          %v1268 = vlaneseq
          %v1269 = vshrl.u32 %v1268, 7
          %v1270 = vsub.s32 0, %v1269
          %v1271 = vrot.slane %v452, %v1270
          %v1276 = vunpack.c.l.b16 %v674
          %v1277 = vunpack.c.l.b16 %v675
          %v1278 = vunpack.c.l.b16 %v676
          %v1279 = vunpack.c.l.b16 %v677
          %v1280 = vpack.c.b16 %v1277, %v1276
          %v1281 = vpack.c.b16 %v1279, %v1278
          %vm1284 = vcmask 261120
          %v1286 = vsel %vm1284, %v1267, 0
          %1288 = vmatprep.subr.bf16.mxu0 0
          %1289 = vmatpush1.bf16.msra.mxu0 0
          %1290 = vmatprep.subr.bf16.mxu0 0
          %1291 = vmatpush1.bf16.msra.mxu0 0
          %1292 = vmatprep.subr.bf16.mxu0 0
          %1293 = vmatpush1.bf16.msra.mxu0 0
          %1294 = vmatprep.subr.bf16.mxu0 0
          %1295 = vmatpush1.bf16.msra.mxu0 0
          %1296 = vmatprep.subr.bf16.mxu0 0
          %1297 = vmatpush1.bf16.msra.mxu0 0
          %1298 = vmatprep.subr.bf16.mxu0 0
          %1299 = vmatpush1.bf16.msra.mxu0 0
          %1300 = vmatprep.subr.bf16.mxu0 0
          %1301 = vmatpush1.bf16.msra.mxu0 %v1281
          %1302 = vmatprep.subr.bf16.mxu0 0
          %1303 = vmatpush1.bf16.msra.mxu0 %v1280
          %1304 = vmatprep.subr.bf16.mxu0 0
          %1305 = vmatpush2.bf16.msra.mxu0 0
          %1306 = vmatprep.subr.bf16.mxu0 0
          %1307 = vmatpush2.bf16.msra.mxu0 0
          %1308 = vmatprep.subr.bf16.mxu0 0
          %1309 = vmatpush2.bf16.msra.mxu0 0
          %1310 = vmatprep.subr.bf16.mxu0 0
          %1311 = vmatpush2.bf16.msra.mxu0 0
          %1312 = vmatprep.subr.bf16.mxu0 0
          %1313 = vmatpush2.bf16.msra.mxu0 0
          %1314 = vmatprep.subr.bf16.mxu0 0
          %1315 = vmatpush2.bf16.msra.mxu0 0
          %1316 = vmatprep.subr.bf16.mxu0 0
          %1317 = vmatpush2.bf16.msra.mxu0 0
          %1318 = vmatprep.subr.bf16.mxu0 0
          %1319 = vmatpush2.bf16.msra.mxu0 0
          %1320 = vmatprep.mubr.bf16.mxu0 0
          %1321 = vmatmul.mubr.bf16.gmra.mxu0 %v1286
          %v1322 = vpop.f32.mrf.mxu0
          %v1323 = vadd.f32 %v1271, %v1322
          %v1324 = vpop.f32.mrf.mxu0
          %v1325 = vpop.f32.mrf.mxu0
          %v1326 = vpop.f32.mrf.mxu0
          %1327 = vdwg.mxu0
          %v1328 = vunpack.c.l.bf16 %v453
          %v1329 = vadd.f32 %v1323, %v1328
          %v1330 = vsel %vm1284, %v1329, 0.0
          %1331 = vadd.xlane.f32.xlu0 %v1330
          %v1332 = vpop.xlane.xlu0 %1331
          %v1333 = vrcp.pop 32.0
          %v1334 = vmul.f32 %v1332, %v1333
          %v1335 = vsub.f32 %v1329, %v1334
          %v1336 = vmul.f32 %v1335, %v1335
          %v1337 = vsel %vm1284, %v1336, 0.0
          %1338 = vadd.xlane.f32.xlu0 %v1337
          %v1339 = vpop.xlane.xlu0 %1338
          %v1340 = vmul.f32 %v1339, %v1333
          %v1341 = vadd.f32 %v1340, 1e-05
          %v1342 = vrsqrt.pop %v1341
          %v1343 = vmul.f32 %v1335, %v1342
          %v1344 = vlaneseq
          %v1345 = vshrl.u32 %v1344, 7
          %v1346 = vsub.s32 1, %v1345
          %v1347 = vrot.slane %v452, %v1346
          %v1348 = vmul.f32 %v1343, %v1347
          %v1349 = vlaneseq
          %v1350 = vshrl.u32 %v1349, 7
          %v1351 = vsub.s32 2, %v1350
          %v1352 = vrot.slane %v452, %v1351
          %v1353 = vadd.f32 %v1348, %v1352
          %1354 = vst.msk [vmem:[#allocation3] sm:$0xff] %vm1284, %v1353
          %v1355 = vpack.c.bf16 %v1353, %v1353
          %vm1356 = vcmask 257024
          %1357 = vst.msk [vmem:[#allocation4] sm:$0xf] %vm1356, %v1355
        $region56: #{tpu_custom_call.1} parent=47 // pred_fallthru
          _
        %v1358 = vld [vmem:[#allocation4] sm:$0xf]
        %v1359 = vld [vmem:[%s422] sm:$0xf]
        %v1360 = vld [vmem:[%s422 + $0x4] sm:$0xf]
        %v1361 = vld [vmem:[%s422 + $0x8] sm:$0xf]
        %v1362 = vld [vmem:[%s422 + $0xc] sm:$0xf]
        %v1363 = vld [vmem:[%s428] sm:$0x1]
        %v1365 = vlaneseq
        %v1366 = vshrl.u32 %v1365, 7
        %v1367 = vsub.s32 0, %v1366
        %v1368 = vrot.slane %v1363, %v1367
        %v1374 = vunpack.c.l.b16 %v1359
        %v1375 = vunpack.c.l.b16 %v1360
        %v1376 = vunpack.c.l.b16 %v1361
        %v1377 = vunpack.c.l.b16 %v1362
        %v1378 = vpack.c.b16 %v1375, %v1374
        %v1379 = vpack.c.b16 %v1377, %v1376
        %vm1382 = vcmask 261120
        %v1384 = vsel %vm1382, %v1358, 0
        %1386 = vmatprep.subr.bf16.mxu0 0
        %1387 = vmatpush1.bf16.msra.mxu0 0
        %1388 = vmatprep.subr.bf16.mxu0 0
        %1389 = vmatpush1.bf16.msra.mxu0 0
        %1390 = vmatprep.subr.bf16.mxu0 0
        %1391 = vmatpush1.bf16.msra.mxu0 0
        %1392 = vmatprep.subr.bf16.mxu0 0
        %1393 = vmatpush1.bf16.msra.mxu0 0
        %1394 = vmatprep.subr.bf16.mxu0 0
        %1395 = vmatpush1.bf16.msra.mxu0 0
        %1396 = vmatprep.subr.bf16.mxu0 0
        %1397 = vmatpush1.bf16.msra.mxu0 0
        %1398 = vmatprep.subr.bf16.mxu0 0
        %1399 = vmatpush1.bf16.msra.mxu0 %v1379
        %1400 = vmatprep.subr.bf16.mxu0 0
        %1401 = vmatpush1.bf16.msra.mxu0 %v1378
        %1402 = vmatprep.subr.bf16.mxu0 0
        %1403 = vmatpush2.bf16.msra.mxu0 0
        %1404 = vmatprep.subr.bf16.mxu0 0
        %1405 = vmatpush2.bf16.msra.mxu0 0
        %1406 = vmatprep.subr.bf16.mxu0 0
        %1407 = vmatpush2.bf16.msra.mxu0 0
        %1408 = vmatprep.subr.bf16.mxu0 0
        %1409 = vmatpush2.bf16.msra.mxu0 0
        %1410 = vmatprep.subr.bf16.mxu0 0
        %1411 = vmatpush2.bf16.msra.mxu0 0
        %1412 = vmatprep.subr.bf16.mxu0 0
        %1413 = vmatpush2.bf16.msra.mxu0 0
        %1414 = vmatprep.subr.bf16.mxu0 0
        %1415 = vmatpush2.bf16.msra.mxu0 0
        %1416 = vmatprep.subr.bf16.mxu0 0
        %1417 = vmatpush2.bf16.msra.mxu0 0
        %1418 = vmatprep.mubr.bf16.mxu0 0
        %1419 = vmatmul.mubr.bf16.gmra.mxu0 %v1384
        %v1420 = vpop.f32.mrf.mxu0
        %v1421 = vadd.f32 %v1368, %v1420
        %v1422 = vpop.f32.mrf.mxu0
        %v1423 = vpop.f32.mrf.mxu0
        %v1424 = vpop.f32.mrf.mxu0
        %1425 = vdwg.mxu0
        %v1426 = vmax.f32 %v1421, 0.0
        %v1427 = vpack.c.bf16 %v1426, %v1426
        %v1428 = vld [vmem:[%s437] sm:$0xf]
        %v1429 = vld [vmem:[%s437 + $0x4] sm:$0xf]
        %v1430 = vld [vmem:[%s437 + $0x8] sm:$0xf]
        %v1431 = vld [vmem:[%s437 + $0xc] sm:$0xf]
        %v1432 = vld [vmem:[%s437 + $0x10] sm:$0xf]
        %v1433 = vld [vmem:[%s437 + $0x14] sm:$0xf]
        %v1434 = vld [vmem:[%s437 + $0x18] sm:$0xf]
        %v1435 = vld [vmem:[%s437 + $0x1c] sm:$0xf]
        %v1436 = vld [vmem:[%s437 + $0x20] sm:$0xf]
        %v1437 = vld [vmem:[%s437 + $0x24] sm:$0xf]
        %v1438 = vld [vmem:[%s437 + $0x28] sm:$0xf]
        %v1439 = vld [vmem:[%s437 + $0x2c] sm:$0xf]
        %v1440 = vld [vmem:[%s437 + $0x30] sm:$0xf]
        %v1441 = vld [vmem:[%s437 + $0x34] sm:$0xf]
        %v1442 = vld [vmem:[%s437 + $0x38] sm:$0xf]
        %v1443 = vld [vmem:[%s437 + $0x3c] sm:$0xf]
        %v1460 = vunpack.c.l.b16 %v1428
        %v1461 = vunpack.c.l.b16 %v1429
        %v1462 = vunpack.c.l.b16 %v1430
        %v1463 = vunpack.c.l.b16 %v1431
        %v1464 = vunpack.c.l.b16 %v1432
        %v1465 = vunpack.c.l.b16 %v1433
        %v1466 = vunpack.c.l.b16 %v1434
        %v1467 = vunpack.c.l.b16 %v1435
        %v1468 = vunpack.c.l.b16 %v1436
        %v1469 = vunpack.c.l.b16 %v1437
        %v1470 = vunpack.c.l.b16 %v1438
        %v1471 = vunpack.c.l.b16 %v1439
        %v1472 = vunpack.c.l.b16 %v1440
        %v1473 = vunpack.c.l.b16 %v1441
        %v1474 = vunpack.c.l.b16 %v1442
        %v1475 = vunpack.c.l.b16 %v1443
        %v1476 = vpack.c.b16 %v1461, %v1460
        %v1477 = vpack.c.b16 %v1463, %v1462
        %v1478 = vpack.c.b16 %v1465, %v1464
        %v1479 = vpack.c.b16 %v1467, %v1466
        %v1480 = vpack.c.b16 %v1469, %v1468
        %v1481 = vpack.c.b16 %v1471, %v1470
        %v1482 = vpack.c.b16 %v1473, %v1472
        %v1483 = vpack.c.b16 %v1475, %v1474
        %1492 = vmatprep.subr.bf16.mxu0 0
        %1493 = vmatpush1.bf16.msra.mxu0 %v1483
        %1494 = vmatprep.subr.bf16.mxu0 0
        %1495 = vmatpush1.bf16.msra.mxu0 %v1482
        %1496 = vmatprep.subr.bf16.mxu0 0
        %1497 = vmatpush1.bf16.msra.mxu0 %v1481
        %1498 = vmatprep.subr.bf16.mxu0 0
        %1499 = vmatpush1.bf16.msra.mxu0 %v1480
        %1500 = vmatprep.subr.bf16.mxu0 0
        %1501 = vmatpush1.bf16.msra.mxu0 %v1479
        %1502 = vmatprep.subr.bf16.mxu0 0
        %1503 = vmatpush1.bf16.msra.mxu0 %v1478
        %1504 = vmatprep.subr.bf16.mxu0 0
        %1505 = vmatpush1.bf16.msra.mxu0 %v1477
        %1506 = vmatprep.subr.bf16.mxu0 0
        %1507 = vmatpush1.bf16.msra.mxu0 %v1476
        %1508 = vmatprep.subr.bf16.mxu0 0
        %1509 = vmatpush2.bf16.msra.mxu0 0
        %1510 = vmatprep.subr.bf16.mxu0 0
        %1511 = vmatpush2.bf16.msra.mxu0 0
        %1512 = vmatprep.subr.bf16.mxu0 0
        %1513 = vmatpush2.bf16.msra.mxu0 0
        %1514 = vmatprep.subr.bf16.mxu0 0
        %1515 = vmatpush2.bf16.msra.mxu0 0
        %1516 = vmatprep.subr.bf16.mxu0 0
        %1517 = vmatpush2.bf16.msra.mxu0 0
        %1518 = vmatprep.subr.bf16.mxu0 0
        %1519 = vmatpush2.bf16.msra.mxu0 0
        %1520 = vmatprep.subr.bf16.mxu0 0
        %1521 = vmatpush2.bf16.msra.mxu0 0
        %1522 = vmatprep.subr.bf16.mxu0 0
        %1523 = vmatpush2.bf16.msra.mxu0 0
        %1524 = vmatprep.mubr.bf16.mxu0 0
        %1525 = vmatmul.mubr.bf16.gmra.mxu0 %v1427
        %v1526 = vpop.f32.mrf.mxu0
        %v1527 = vadd.f32 0.0, %v1526
        %v1528 = vpop.f32.mrf.mxu0
        %v1529 = vpop.f32.mrf.mxu0
        %v1530 = vpop.f32.mrf.mxu0
        %1531 = vdwg.mxu0
        // Predicated region
        $region57: #{tpu_custom_call.1} parent=47 // pred_check
          %p1532 = pneg %p441
        $region58: #{tpu_custom_call.1} parent=47 // pred_check_branch
          %1534 = sbr.rel (%p1532) target = $region60
        $region59: #{tpu_custom_call.1} parent=47 // pred_region
          %1535 = vst.msk [vmem:[#allocation5] sm:$0xff] %vm1382, %v1527
        $region60: #{tpu_custom_call.1} parent=47 // pred_fallthru
          _
        %p1536 = scmp.gt.s32.totalorder %s28, 0
        // Predicated region
        $region61: #{tpu_custom_call.1} parent=47 // pred_check
          %p1537 = pneg %p1536
        $region62: #{tpu_custom_call.1} parent=47 // pred_check_branch
          %1539 = sbr.rel (%p1537) target = $region64
        $region63: #{tpu_custom_call.1} parent=47 // pred_region
          %v1540 = vld [vmem:[#allocation5] sm:$0xff]
          %v1541 = vadd.f32 %v1540, %v1527
          %1542 = vst.msk [vmem:[#allocation5] sm:$0xff] %vm1382, %v1541
        $region64: #{tpu_custom_call.1} parent=47 // pred_fallthru
          _
        // Predicated region
        $region65: #{tpu_custom_call.1} parent=47 // pred_check
          %p1543 = pneg %p441
        $region66: #{tpu_custom_call.1} parent=47 // pred_check_branch
          %1545 = sbr.rel (%p1543) target = $region68
        $region67: #{tpu_custom_call.1} parent=47 // pred_region
          %v1546 = vld [vmem:[%s414] sm:$0x3f]
          %v1547 = vld [vmem:[#allocation5] sm:$0xff]
          %v1548 = vlaneseq
          %v1549 = vshrl.u32 %v1548, 7
          %v1550 = vsub.s32 3, %v1549
          %v1551 = vrot.slane %v1546, %v1550
          %v1552 = vadd.f32 %v1547, %v1551
          %v1553 = vld [vmem:[#allocation3] sm:$0xff]
          %v1554 = vadd.f32 %v1552, %v1553
          %v1555 = vsel %vm1382, %v1554, 0.0
          %1556 = vadd.xlane.f32.xlu0 %v1555
          %v1557 = vpop.xlane.xlu0 %1556
          %v1558 = vrcp.pop 32.0
          %v1559 = vmul.f32 %v1557, %v1558
          %v1560 = vsub.f32 %v1554, %v1559
          %v1561 = vmul.f32 %v1560, %v1560
          %v1562 = vsel %vm1382, %v1561, 0.0
          %1563 = vadd.xlane.f32.xlu0 %v1562
          %v1564 = vpop.xlane.xlu0 %1563
          %v1565 = vmul.f32 %v1564, %v1558
          %v1566 = vadd.f32 %v1565, 1e-05
          %v1567 = vrsqrt.pop %v1566
          %v1568 = vmul.f32 %v1560, %v1567
          %v1569 = vlaneseq
          %v1570 = vshrl.u32 %v1569, 7
          %v1571 = vsub.s32 4, %v1570
          %v1572 = vrot.slane %v1546, %v1571
          %v1573 = vmul.f32 %v1568, %v1572
          %v1574 = vlaneseq
          %v1575 = vshrl.u32 %v1574, 7
          %v1576 = vsub.s32 5, %v1575
          %v1577 = vrot.slane %v1546, %v1576
          %v1578 = vadd.f32 %v1573, %v1577
          %v1579 = vpack.c.bf16 %v1578, %v1578
          %vm1580 = vcmask 257024
          %1581 = vst.msk [vmem:[#allocation2] sm:$0xf] %vm1580, %v1579
        $region68: #{tpu_custom_call.1} parent=47 // pred_fallthru
          _
        %p1582 = scmp.eq.s32.totalorder %s27, 1
        %p1583 = pnand %p441, %p1582
        %p1584 = pneg %p1583
        // Predicated region
        $region69: #{tpu_custom_call.1} parent=47 // pred_check
          _
        $region70: #{tpu_custom_call.1} parent=47 // pred_check_branch
          %1586 = sbr.rel (%p1583) target = $region72
        $region71: #{tpu_custom_call.1} parent=47 // pred_region
          %v1587 = vld [vmem:[#allocation2] sm:$0xf]
          %vm1588 = vcmask 257024
          %1589 = vst.msk [vmem:[%s397] sm:$0xf] %vm1588, %v1587
        $region72: #{tpu_custom_call.1} parent=47 // pred_fallthru
          _
        %s1590 = sand.u32 %s236, 1
        %s1591 = scalar_lea.sflag [#allocation7], %s1590
        %s1592 = sand.u32 %s236, 1
        %s1593 = smul.addr %s1592, 4
        %s1594 = scalar_lea.vmem [#allocation6], %s1593
        // Predicated region
        $region73: #{tpu_custom_call.1} parent=47 // pred_check
          %p1595 = pneg %p246
        $region74: #{tpu_custom_call.1} parent=47 // pred_check_branch
          %1597 = sbr.rel (%p1595) target = $region76
        $region75: #{tpu_custom_call.1} parent=47 // pred_region
          %s1599 = ssub.s32 64, 64
          %1600 = vsyncadd %s1591, %s1599
          %s1601 = smul.addr %s26, 64
          %s1602 = scalar_lea.hbm %s7, %s1601
          %s1604 = sshll.u32 %s1594, 4
          %s1605 = int_to_ptr.vmem [resolvable:$true] %s1604
          %1607 = dma.vmem_to_hbm [thread:$0]  %s1605, 64, %s1602, %s1591
        $region76: #{tpu_custom_call.1} parent=47 // pred_fallthru
          _
      $region48: #{tpu_custom_call.1} parent=5 // pred_fallthru
        _
      %p1608 = scmp.le.s32.totalorder 2, %s16
      // Predicated region
      $region77: #{tpu_custom_call.1} parent=5 // pred_check
        %p1609 = pneg %p1608
      $region78: #{tpu_custom_call.1} parent=5 // pred_check_branch
        %1611 = sbr.rel (%p1609) target = $region80
      $region79: #{tpu_custom_call.1} parent=5 // pred_region
        %s1612 = ssub.s32 %s16, 2
        // Predicated region
        $region81: #{tpu_custom_call.1} parent=79 // pred_check
          %p1613 = pneg %p252
        $region82: #{tpu_custom_call.1} parent=79 // pred_check_branch
          %1615 = sbr.rel (%p1613) target = $region84
        $region83: #{tpu_custom_call.1} parent=79 // pred_region
          %s1616 = sand.u32 %s237, 1
          %s1617 = scalar_lea.sflag [#allocation7], %s1616
          %s1618 = sand.u32 %s237, 1
          %s1619 = smul.addr %s1618, 4
          %s1620 = scalar_lea.vmem [#allocation6], %s1619
          %1621 = dma.done %s1617, 64
        $region84: #{tpu_custom_call.1} parent=79 // pred_fallthru
          _
      $region80: #{tpu_custom_call.1} parent=5 // pred_fallthru
        _
    $region6: #{tpu_custom_call.1} parent=1 // loop_footer
      %s20 = sadd.s32 1, %s16
    $region7: #{tpu_custom_call.1} parent=1 // loop_footer_branch
      %15 = sbr.rel target = $region3
    $region8: #{tpu_custom_call.1} parent=1 // loop_exit
      _
    %1622 = vsyncpa [#allocation7], 1
    %s1623 = scalar_lea.sflag [#allocation7], 1
    %1624 = vsyncpa %s1623, 1

</llo_original>
